<compile_context>
chip_gen: v5e
topology: v5e:2x2
jax: 0.10.0
libtpu: 0.0.40
codegen_flags: <defaults>
</compile_context>

<pallas_src>
import functools

import jax
import jax.numpy as jnp
from jax.experimental import pallas as pl
from jax.experimental.pallas import tpu as pltpu

NUM_GROUPS = 32
EPS = 1e-6
PREC = jax.lax.Precision.HIGHEST  # only used on tiny one-hot stats matmuls


# --------------------------------------------------------------------------- #
# Kernel
# --------------------------------------------------------------------------- #
def groupnorm_kernel(x_ref, gamma_ref, beta_ref, gmap_ref, gmapT_ref, o_ref,
                     *, group_count, eps):
    """GroupNorm over one (batch, group-block) tile.

    x_ref:     (1, C_blk, HW)   — C_blk = GB whole groups worth of channels
    gamma/beta:(C_blk, 1)
    gmap:      (GB, C_blk)      — one-hot channel->group selection
    gmapT:     (C_blk, GB)
    """
    x = x_ref[0].astype(jnp.float32)                       # (C_blk, HW)
    gmap = gmap_ref[...]                                   # (GB, C_blk)
    gmapT = gmapT_ref[...]                                 # (C_blk, GB)
    inv_count = 1.0 / float(group_count)

    # ---- pass 1: per-group mean (f32) ----
    s = jnp.sum(x, axis=-1, keepdims=True)                 # (C_blk, 1) lane reduce
    gs = jnp.dot(gmap, s, preferred_element_type=jnp.float32, precision=PREC)     # (GB, 1)
    mean_c = jnp.dot(gmapT, gs * inv_count,
                     preferred_element_type=jnp.float32, precision=PREC)          # (C_blk, 1)

    # ---- pass 2: centered variance (data already resident in VMEM) ----
    d = x - mean_c
    ss = jnp.sum(d * d, axis=-1, keepdims=True)            # (C_blk, 1)
    gss = jnp.dot(gmap, ss, preferred_element_type=jnp.float32, precision=PREC)   # (GB, 1)
    inv_g = jax.lax.rsqrt(gss * inv_count + eps)           # (GB, 1)  EUP rsqrt
    inv_c = jnp.dot(gmapT, inv_g,
                    preferred_element_type=jnp.float32, precision=PREC)           # (C_blk, 1)

    gamma = gamma_ref[...].astype(jnp.float32)             # (C_blk, 1)
    beta = beta_ref[...].astype(jnp.float32)                # (C_blk, 1)
    o_ref[0] = (d * (inv_c * gamma) + beta).astype(o_ref.dtype)


# --------------------------------------------------------------------------- #
# Wrapper
# --------------------------------------------------------------------------- #
def _groups_per_block(num_groups, cg, hw, itemsize, budget_bytes):
    """Largest divisor GB of num_groups whose block fits the VMEM budget and
    satisfies the (8,128) sublane rule (C_blk % 8 == 0, or the full C)."""
    candidates = [gb for gb in range(num_groups, 0, -1)
                  if num_groups % gb == 0
                  and (gb == num_groups or (gb * cg) % 8 == 0)]
    for gb in candidates:
        if gb * cg * hw * itemsize <= budget_bytes:
            return gb
    return candidates[-1]  # smallest layout-legal block if nothing fits budget


def group_norm(x_nchw, gamma, beta, *, num_groups=NUM_GROUPS, eps=EPS,
               block_budget_bytes=2 << 20):
    """nn.GroupNorm(32, C, eps=1e-6, affine=True) forward.  x: (N, C, H, W)."""
    N, C, H, W = x_nchw.shape
    assert C % num_groups == 0, (C, num_groups)
    HW = H * W
    cg = C // num_groups

    x3 = x_nchw.reshape(N, C, HW)                          # free contiguous reshape

    gb = _groups_per_block(num_groups, cg, HW, 4, block_budget_bytes)
    c_blk = gb * cg
    n_gblk = num_groups // gb

    # One-hot channel->group map for the channels inside one block (same for
    # every block because blocks cover whole, contiguous groups).
    gmap = (jnp.arange(c_blk) // cg == jnp.arange(gb)[:, None]).astype(jnp.float32)
    gmapT = gmap.T

    kern = functools.partial(groupnorm_kernel, group_count=cg * HW, eps=eps)
    out = pl.pallas_call(
        kern,
        out_shape=jax.ShapeDtypeStruct((N, C, HW), x_nchw.dtype),
        grid=(N, n_gblk),
        in_specs=[
            pl.BlockSpec((1, c_blk, HW), lambda n, g: (n, g, 0)),
            pl.BlockSpec((c_blk, 1), lambda n, g: (g, 0)),
            pl.BlockSpec((c_blk, 1), lambda n, g: (g, 0)),
            pl.BlockSpec((gb, c_blk), lambda n, g: (0, 0)),
            pl.BlockSpec((c_blk, gb), lambda n, g: (0, 0)),
        ],
        out_specs=pl.BlockSpec((1, c_blk, HW), lambda n, g: (n, g, 0)),
        compiler_params=pltpu.CompilerParams(
            dimension_semantics=("parallel", "parallel")),
    )(x3, gamma.reshape(C, 1), beta.reshape(C, 1), gmap, gmapT)

    return out.reshape(N, C, H, W)


# --------------------------------------------------------------------------- #
# Pure-JAX reference (correctness check)
# --------------------------------------------------------------------------- #
def group_norm_ref(x, gamma, beta, num_groups=NUM_GROUPS, eps=EPS):
    N, C, H, W = x.shape
    xg = x.reshape(N, num_groups, -1)
    mean = xg.mean(-1, keepdims=True)
    var = xg.var(-1, keepdims=True)
    xn = ((xg - mean) / jnp.sqrt(var + eps)).reshape(N, C, H, W)
    return xn * gamma[None, :, None, None] + beta[None, :, None, None]


# --------------------------------------------------------------------------- #
# Main
# --------------------------------------------------------------------------- #
if __name__ == "__main__":
    # GroupNorm(num_groups=32) requires channels % 32 == 0.
    N, C, H, W = 2, 64, 16, 16

    key = jax.random.PRNGKey(0)
    k1, k2, k3 = jax.random.split(key, 3)
    # Nonzero mean / nonunit scale so the centered-variance path is exercised.
    x = 2.0 * jax.random.normal(k1, (N, C, H, W), jnp.float32) + 3.0
    gamma = 1.0 + 0.1 * jax.random.normal(k2, (C,), jnp.float32)
    beta = 0.1 * jax.random.normal(k3, (C,), jnp.float32)

    ref = jax.block_until_ready(group_norm_ref(x, gamma, beta))

    # 1) default block sizing (whole-C block at this small shape)
    out = jax.block_until_ready(jax.jit(group_norm)(x, gamma, beta))
    assert out.shape == (N, C, H, W), out.shape
    assert jnp.allclose(out, ref, atol=1e-4, rtol=1e-4), (
        float(jnp.max(jnp.abs(out - ref))))

    # 2) force a tiny per-block budget so the group-block-tiled grid path
    #    (grid = (N, G//GB) with GB < 32) is also exercised.
    tiled_fn = jax.jit(functools.partial(group_norm, block_budget_bytes=32 * 1024))
    out_t = jax.block_until_ready(tiled_fn(x, gamma, beta))
    assert jnp.allclose(out_t, ref, atol=1e-4, rtol=1e-4), (
        float(jnp.max(jnp.abs(out_t - ref))))

    print("KERNEL_OK")
</pallas_src>

<mosaic_0001>
module attributes {stable_mosaic.version = 11 : i64} {
  func.func @groupnorm_kernel(%arg0: i32, %arg1: i32, %arg2: memref<1x64x256xf32, #tpu.memory_space<vmem>>, %arg3: memref<64x1xf32, #tpu.memory_space<vmem>>, %arg4: memref<64x1xf32, #tpu.memory_space<vmem>>, %arg5: memref<32x64xf32, #tpu.memory_space<vmem>>, %arg6: memref<64x32xf32, #tpu.memory_space<vmem>>, %arg7: memref<1x64x256xf32, #tpu.memory_space<vmem>>) attributes {dimension_semantics = [#tpu.dimension_semantics<parallel>, #tpu.dimension_semantics<parallel>], iteration_bounds = array<i64: 2, 1>, scalar_prefetch = 0 : i64, scratch_operands = 0 : i64, tpu.core_type = #tpu.core_type<tc>, window_params = [{transform_indices = @transform_0, window_bounds = array<i64: 1, 64, 256>}, {transform_indices = @transform_1, window_bounds = array<i64: 64, 1>}, {transform_indices = @transform_2, window_bounds = array<i64: 64, 1>}, {pipeline_mode = #tpu.pipeline_mode<synchronous>, transform_indices = @transform_3, window_bounds = array<i64: 32, 64>}, {pipeline_mode = #tpu.pipeline_mode<synchronous>, transform_indices = @transform_4, window_bounds = array<i64: 64, 32>}, {transform_indices = @transform_5, window_bounds = array<i64: 1, 64, 256>}]} {
    %c0 = arith.constant 0 : index
    %c0_0 = arith.constant 0 : index
    %c0_1 = arith.constant 0 : index
    %0 = vector.load %arg2[%c0, %c0_0, %c0_1] : memref<1x64x256xf32, #tpu.memory_space<vmem>>, vector<1x64x256xf32>
    %1 = vector.shape_cast %0 : vector<1x64x256xf32> to vector<64x256xf32>
    %c0_2 = arith.constant 0 : index
    %c0_3 = arith.constant 0 : index
    %2 = vector.load %arg5[%c0_2, %c0_3] : memref<32x64xf32, #tpu.memory_space<vmem>>, vector<32x64xf32>
    %c0_4 = arith.constant 0 : index
    %c0_5 = arith.constant 0 : index
    %3 = vector.load %arg6[%c0_4, %c0_5] : memref<64x32xf32, #tpu.memory_space<vmem>>, vector<64x32xf32>
    %cst = arith.constant dense<0.000000e+00> : vector<64xf32>
    %4 = vector.multi_reduction <add>, %1, %cst [1] : vector<64x256xf32> to vector<64xf32>
    %5 = vector.shape_cast %4 : vector<64xf32> to vector<64x1xf32>
    %cst_6 = arith.constant dense<0.000000e+00> : vector<32x1xf32>
    %6 = tpu.matmul %2, %5, %cst_6 {dimension_numbers = #tpu.dot_dimension_numbers<[1], [0], [0], [1], [0, 0, 1, 1], [], []>, precision = #tpu.contract_precision<fp32>} : vector<32x64xf32>, vector<64x1xf32>, vector<32x1xf32> -> vector<32x1xf32>
    %cst_7 = arith.constant 0.001953125 : f32
    %7 = vector.broadcast %cst_7 : f32 to vector<32x1xf32>
    %8 = arith.mulf %6, %7 : vector<32x1xf32>
    %cst_8 = arith.constant dense<0.000000e+00> : vector<64x1xf32>
    %9 = tpu.matmul %3, %8, %cst_8 {dimension_numbers = #tpu.dot_dimension_numbers<[1], [0], [0], [1], [0, 0, 1, 1], [], []>, precision = #tpu.contract_precision<fp32>} : vector<64x32xf32>, vector<32x1xf32>, vector<64x1xf32> -> vector<64x1xf32>
    %10 = vector.broadcast %9 : vector<64x1xf32> to vector<64x256xf32>
    %11 = arith.subf %1, %10 : vector<64x256xf32>
    %12 = arith.mulf %11, %11 : vector<64x256xf32>
    %cst_9 = arith.constant dense<0.000000e+00> : vector<64xf32>
    %13 = vector.multi_reduction <add>, %12, %cst_9 [1] : vector<64x256xf32> to vector<64xf32>
    %14 = vector.shape_cast %13 : vector<64xf32> to vector<64x1xf32>
    %cst_10 = arith.constant dense<0.000000e+00> : vector<32x1xf32>
    %15 = tpu.matmul %2, %14, %cst_10 {dimension_numbers = #tpu.dot_dimension_numbers<[1], [0], [0], [1], [0, 0, 1, 1], [], []>, precision = #tpu.contract_precision<fp32>} : vector<32x64xf32>, vector<64x1xf32>, vector<32x1xf32> -> vector<32x1xf32>
    %cst_11 = arith.constant 0.001953125 : f32
    %16 = vector.broadcast %cst_11 : f32 to vector<32x1xf32>
    %17 = arith.mulf %15, %16 : vector<32x1xf32>
    %cst_12 = arith.constant 9.99999997E-7 : f32
    %18 = vector.broadcast %cst_12 : f32 to vector<32x1xf32>
    %19 = arith.addf %17, %18 : vector<32x1xf32>
    %20 = math.rsqrt %19 : vector<32x1xf32>
    %cst_13 = arith.constant dense<0.000000e+00> : vector<64x1xf32>
    %21 = tpu.matmul %3, %20, %cst_13 {dimension_numbers = #tpu.dot_dimension_numbers<[1], [0], [0], [1], [0, 0, 1, 1], [], []>, precision = #tpu.contract_precision<fp32>} : vector<64x32xf32>, vector<32x1xf32>, vector<64x1xf32> -> vector<64x1xf32>
    %c0_14 = arith.constant 0 : index
    %c0_15 = arith.constant 0 : index
    %22 = vector.load %arg3[%c0_14, %c0_15] : memref<64x1xf32, #tpu.memory_space<vmem>>, vector<64x1xf32>
    %c0_16 = arith.constant 0 : index
    %c0_17 = arith.constant 0 : index
    %23 = vector.load %arg4[%c0_16, %c0_17] : memref<64x1xf32, #tpu.memory_space<vmem>>, vector<64x1xf32>
    %24 = arith.mulf %21, %22 : vector<64x1xf32>
    %25 = vector.broadcast %24 : vector<64x1xf32> to vector<64x256xf32>
    %26 = arith.mulf %11, %25 : vector<64x256xf32>
    %27 = vector.broadcast %23 : vector<64x1xf32> to vector<64x256xf32>
    %28 = arith.addf %26, %27 : vector<64x256xf32>
    %c0_18 = arith.constant 0 : index
    %c0_19 = arith.constant 0 : index
    %c0_20 = arith.constant 0 : index
    %29 = vector.load %arg7[%c0_18, %c0_19, %c0_20] : memref<1x64x256xf32, #tpu.memory_space<vmem>>, vector<1x64x256xf32>
    %30 = vector.shape_cast %29 : vector<1x64x256xf32> to vector<64x256xf32>
    %31 = vector.shape_cast %28 : vector<64x256xf32> to vector<1x64x256xf32>
    tpu.vector_store %arg7[%c0_18, %c0_19, %c0_20], %31 {strides = array<i32>} : memref<1x64x256xf32, #tpu.memory_space<vmem>>, vector<1x64x256xf32>,
    return
  }
  func.func @transform_0(%arg0: i32, %arg1: i32) -> (i32, i32, i32) {
    %c0_i32 = arith.constant 0 : i32
    %c0_i32_0 = arith.constant 0 : i32
    return %arg0, %arg1, %c0_i32 : i32, i32, i32
  }
  func.func @transform_1(%arg0: i32, %arg1: i32) -> (i32, i32) {
    %c0_i32 = arith.constant 0 : i32
    %c0_i32_0 = arith.constant 0 : i32
    return %arg1, %c0_i32 : i32, i32
  }
  func.func @transform_2(%arg0: i32, %arg1: i32) -> (i32, i32) {
    %c0_i32 = arith.constant 0 : i32
    %c0_i32_0 = arith.constant 0 : i32
    return %arg1, %c0_i32 : i32, i32
  }
  func.func @transform_3(%arg0: i32, %arg1: i32) -> (i32, i32) {
    %c0_i32 = arith.constant 0 : i32
    %c0_i32_0 = arith.constant 0 : i32
    %c0_i32_1 = arith.constant 0 : i32
    return %c0_i32, %c0_i32_0 : i32, i32
  }
  func.func @transform_4(%arg0: i32, %arg1: i32) -> (i32, i32) {
    %c0_i32 = arith.constant 0 : i32
    %c0_i32_0 = arith.constant 0 : i32
    %c0_i32_1 = arith.constant 0 : i32
    return %c0_i32, %c0_i32_0 : i32, i32
  }
  func.func @transform_5(%arg0: i32, %arg1: i32) -> (i32, i32, i32) {
    %c0_i32 = arith.constant 0 : i32
    %c0_i32_0 = arith.constant 0 : i32
    return %arg0, %arg1, %c0_i32 : i32, i32, i32
  }
}

</mosaic_0001>

<llo_original>
// kernel: group_norm.1
$region0: #{group_norm.1}
  #allocation0 [shape = 'u32[]', space=smem, size = 0x4, offset = 0x4, fixed_abs, tag = 'smem constant byte address 0x4 - core index']
  #allocation1 [shape = 'u32[72,128]{1,0:T(1,128)}', space=vmem, size = 0x9000, scoped, tag = 'internal scratch']
  %s0 = inlined_call_operand.vmem [shape: f32[2,64,256], index: 0, kind: input, shape index: {}]
  %s1 = inlined_call_operand.vmem [shape: f32[64,1], index: 1, kind: input, shape index: {}]
  %s2 = inlined_call_operand.vmem [shape: f32[64,1], index: 2, kind: input, shape index: {}]
  %s3 = inlined_call_operand.vmem [shape: f32[32,64], index: 3, kind: input, shape index: {}]
  %s4 = inlined_call_operand.vmem [shape: f32[64,32], index: 4, kind: input, shape index: {}]
  %s5 = inlined_call_operand.vmem [shape: f32[2,64,256], index: 5, kind: output, shape index: {}]
  %s6 = sld [smem:[#allocation0]]
  $region53: #{group_norm.1} parent=0
    _
  %s8 = ssub.s32 1, %s6
  %s9 = scalar_select 0, %s8, %s6
  loop: start=0, step=1, limit=4
  $region2: #{group_norm.1} parent=0 // loop_pre_header
    _
  $region3: #{group_norm.1} parent=0 // loop_header
    %s11 = sphi 0, %s15
    %p12 = scmp.ge.s32.totalorder %s11, 4
    %s18 = sphi 0, %s30
    %s19 = sphi 0, %s26
    %s20 = sphi 0, %s18
    %s21 = sphi 0, %s19
    %s22 = sphi 0, %s20
    %s23 = sphi 0, %s21
    %s35 = sphi 0, %s37
    %s38 = sphi 0, %s35
    %s39 = sphi 0, %s38
    %s55 = sphi 0, %s39
    %s61 = sphi 0, %s63
    %s64 = sphi 0, %s61
    %s65 = sphi 0, %s64
    %s81 = sphi 0, %s65
    %s87 = sphi 0, %s89
    %s90 = sphi 0, %s87
    %s91 = sphi 0, %s90
    %s107 = sphi 0, %s91
    %s111 = sphi 0, %s111
    %s113 = sphi 0, %s111
    %s114 = sphi 0, %s113
    %s128 = sphi 0, %s114
    %s132 = sphi 0, %s132
    %s134 = sphi 0, %s132
    %s135 = sphi 0, %s134
    %s149 = sphi 0, %s135
    %s157 = sphi 0, %s159
    %s160 = sphi 0, %s157
    %s161 = sphi 0, %s160
    %s177 = sphi 0, %s161
  $region4: #{group_norm.1} parent=0 // loop_header_branch
    %14 = sbr.rel (%p12) target = $region8
  $region5: #{group_norm.1} parent=0 // loop_body
    %s16 = ssub.s32 %s11, 1
    %s17 = ssub.s32 %s11, 2
    %s24 = sadd.s32 1, %s19
    %p25 = scmp.ge.s32.totalorder %s24, 1
    %s26 = scalar_select %p25, 0, %s24
    %s27 = sadd.s32 1, %s18
    %s28 = scalar_select %p25, %s27, %s18
    %p29 = scmp.ge.s32.totalorder %s28, 2
    %s30 = scalar_select %p29, 0, %s28
    %s31 = ssub.s32 %s18, %s30
    %s32 = ssub.s32 %s19, %s26
    %s33 = sor.u32 %s31, %s32
    %p34 = scmp.eq.s32.totalorder %s33, 0
    %s36 = sadd.s32 %s35, 1
    %s37 = scalar_select %p34, %s35, %s36
    %p40 = pneg %p34
    %p41 = scmp.eq.s32.totalorder %s11, 1
    %p42 = por %p40, %p41
    %p43 = scmp.ne.s32.totalorder %s35, %s38
    %p44 = scmp.eq.s32.totalorder %s11, 0
    %p45 = por %p43, %p44
    %p46 = scmp.ne.s32.totalorder %s35, %s38
    %p47 = scmp.eq.s32.totalorder %s16, 1
    %p48 = por %p46, %p47
    %p49 = scmp.ne.s32.totalorder %s38, %s39
    %p50 = scmp.eq.s32.totalorder %s16, 0
    %p51 = por %p49, %p50
    %p52 = scmp.ne.s32.totalorder %s38, %s39
    %p53 = scmp.eq.s32.totalorder %s17, 1
    %p54 = por %p52, %p53
    %p56 = scmp.ne.s32.totalorder %s39, %s55
    %p57 = scmp.eq.s32.totalorder %s17, 0
    %p58 = por %p56, %p57
    %s59 = ssub.s32 %s19, %s26
    %p60 = scmp.eq.s32.totalorder %s59, 0
    %s62 = sadd.s32 %s61, 1
    %s63 = scalar_select %p60, %s61, %s62
    %p66 = pneg %p60
    %p67 = scmp.eq.s32.totalorder %s11, 1
    %p68 = por %p66, %p67
    %p69 = scmp.ne.s32.totalorder %s61, %s64
    %p70 = scmp.eq.s32.totalorder %s11, 0
    %p71 = por %p69, %p70
    %p72 = scmp.ne.s32.totalorder %s61, %s64
    %p73 = scmp.eq.s32.totalorder %s16, 1
    %p74 = por %p72, %p73
    %p75 = scmp.ne.s32.totalorder %s64, %s65
    %p76 = scmp.eq.s32.totalorder %s16, 0
    %p77 = por %p75, %p76
    %p78 = scmp.ne.s32.totalorder %s64, %s65
    %p79 = scmp.eq.s32.totalorder %s17, 1
    %p80 = por %p78, %p79
    %p82 = scmp.ne.s32.totalorder %s65, %s81
    %p83 = scmp.eq.s32.totalorder %s17, 0
    %p84 = por %p82, %p83
    %s85 = ssub.s32 %s19, %s26
    %p86 = scmp.eq.s32.totalorder %s85, 0
    %s88 = sadd.s32 %s87, 1
    %s89 = scalar_select %p86, %s87, %s88
    %p92 = pneg %p86
    %p93 = scmp.eq.s32.totalorder %s11, 1
    %p94 = por %p92, %p93
    %p95 = scmp.ne.s32.totalorder %s87, %s90
    %p96 = scmp.eq.s32.totalorder %s11, 0
    %p97 = por %p95, %p96
    %p98 = scmp.ne.s32.totalorder %s87, %s90
    %p99 = scmp.eq.s32.totalorder %s16, 1
    %p100 = por %p98, %p99
    %p101 = scmp.ne.s32.totalorder %s90, %s91
    %p102 = scmp.eq.s32.totalorder %s16, 0
    %p103 = por %p101, %p102
    %p104 = scmp.ne.s32.totalorder %s90, %s91
    %p105 = scmp.eq.s32.totalorder %s17, 1
    %p106 = por %p104, %p105
    %p108 = scmp.ne.s32.totalorder %s91, %s107
    %p109 = scmp.eq.s32.totalorder %s17, 0
    %p110 = por %p108, %p109
    %s112 = sadd.s32 %s111, 1
    %p115 = scmp.eq.s32.totalorder %s11, 1
    %p116 = scmp.ne.s32.totalorder %s111, %s113
    %p117 = scmp.eq.s32.totalorder %s11, 0
    %p118 = por %p116, %p117
    %p119 = scmp.ne.s32.totalorder %s111, %s113
    %p120 = scmp.eq.s32.totalorder %s16, 1
    %p121 = por %p119, %p120
    %p122 = scmp.ne.s32.totalorder %s113, %s114
    %p123 = scmp.eq.s32.totalorder %s16, 0
    %p124 = por %p122, %p123
    %p125 = scmp.ne.s32.totalorder %s113, %s114
    %p126 = scmp.eq.s32.totalorder %s17, 1
    %p127 = por %p125, %p126
    %p129 = scmp.ne.s32.totalorder %s114, %s128
    %p130 = scmp.eq.s32.totalorder %s17, 0
    %p131 = por %p129, %p130
    %s133 = sadd.s32 %s132, 1
    %p136 = scmp.eq.s32.totalorder %s11, 1
    %p137 = scmp.ne.s32.totalorder %s132, %s134
    %p138 = scmp.eq.s32.totalorder %s11, 0
    %p139 = por %p137, %p138
    %p140 = scmp.ne.s32.totalorder %s132, %s134
    %p141 = scmp.eq.s32.totalorder %s16, 1
    %p142 = por %p140, %p141
    %p143 = scmp.ne.s32.totalorder %s134, %s135
    %p144 = scmp.eq.s32.totalorder %s16, 0
    %p145 = por %p143, %p144
    %p146 = scmp.ne.s32.totalorder %s134, %s135
    %p147 = scmp.eq.s32.totalorder %s17, 1
    %p148 = por %p146, %p147
    %p150 = scmp.ne.s32.totalorder %s135, %s149
    %p151 = scmp.eq.s32.totalorder %s17, 0
    %p152 = por %p150, %p151
    %s153 = ssub.s32 %s18, %s30
    %s154 = ssub.s32 %s19, %s26
    %s155 = sor.u32 %s153, %s154
    %p156 = scmp.eq.s32.totalorder %s155, 0
    %s158 = sadd.s32 %s157, 1
    %s159 = scalar_select %p156, %s157, %s158
    %p162 = pneg %p156
    %p163 = scmp.eq.s32.totalorder %s11, 1
    %p164 = por %p162, %p163
    %p165 = scmp.ne.s32.totalorder %s157, %s160
    %p166 = scmp.eq.s32.totalorder %s11, 0
    %p167 = por %p165, %p166
    %p168 = scmp.ne.s32.totalorder %s157, %s160
    %p169 = scmp.eq.s32.totalorder %s16, 1
    %p170 = por %p168, %p169
    %p171 = scmp.ne.s32.totalorder %s160, %s161
    %p172 = scmp.eq.s32.totalorder %s16, 0
    %p173 = por %p171, %p172
    %p174 = scmp.ne.s32.totalorder %s160, %s161
    %p175 = scmp.eq.s32.totalorder %s17, 1
    %p176 = por %p174, %p175
    %p178 = scmp.ne.s32.totalorder %s161, %s177
    %p179 = scmp.eq.s32.totalorder %s17, 0
    %p180 = por %p178, %p179
    %p181 = scmp.le.s32.totalorder 1, %s11
    %p182 = scmp.lt.s32.totalorder %s11, 3
    %p183 = pnand %p181, %p182
    %p184 = pneg %p183
    // Predicated region
    $region9: #{group_norm.1} parent=5 // pred_check
      _
    $region10: #{group_norm.1} parent=5 // pred_check_branch
      %186 = sbr.rel (%p183) target = $region12
    $region11: #{group_norm.1} parent=5 // pred_region
      %s187 = ssub.s32 %s11, 1
      // Predicated region
      $region13: #{group_norm.1} parent=11 // pred_check
        %p188 = pneg %p77
      $region14: #{group_norm.1} parent=11 // pred_check_branch
        %190 = sbr.rel (%p188) target = $region16
      $region15: #{group_norm.1} parent=11 // pred_region
        %s191 = smul.u32 8, %s21
        %p192 = scmp.lt.s32.totalorder %s191, 7
        %s193 = scalar_select %p192, %s191, 7
        %s194 = smul.addr %s193, 8
        %s195 = scalar_lea.vmem %s1, %s194
        %s196 = smul.u32 8, %s21
      $region16: #{group_norm.1} parent=11 // pred_fallthru
        _
      // Predicated region
      $region17: #{group_norm.1} parent=11 // pred_check
        %p197 = pneg %p103
      $region18: #{group_norm.1} parent=11 // pred_check_branch
        %199 = sbr.rel (%p197) target = $region20
      $region19: #{group_norm.1} parent=11 // pred_region
        %s200 = smul.u32 8, %s21
        %p201 = scmp.lt.s32.totalorder %s200, 7
        %s202 = scalar_select %p201, %s200, 7
        %s203 = smul.addr %s202, 8
        %s204 = scalar_lea.vmem %s2, %s203
        %s205 = smul.u32 8, %s21
      $region20: #{group_norm.1} parent=11 // pred_fallthru
        _
      // Predicated region
      $region21: #{group_norm.1} parent=11 // pred_check
        %p206 = pneg %p124
      $region22: #{group_norm.1} parent=11 // pred_check_branch
        %208 = sbr.rel (%p206) target = $region24
      $region23: #{group_norm.1} parent=11 // pred_region
        _
      $region24: #{group_norm.1} parent=11 // pred_fallthru
        _
      // Predicated region
      $region25: #{group_norm.1} parent=11 // pred_check
        %p209 = pneg %p145
      $region26: #{group_norm.1} parent=11 // pred_check_branch
        %211 = sbr.rel (%p209) target = $region28
      $region27: #{group_norm.1} parent=11 // pred_region
        _
      $region28: #{group_norm.1} parent=11 // pred_fallthru
        _
    $region12: #{group_norm.1} parent=5 // pred_fallthru
      _
    %p212 = scmp.lt.s32.totalorder %s11, 2
    // Predicated region
    $region29: #{group_norm.1} parent=5 // pred_check
      %p213 = pneg %p212
    $region30: #{group_norm.1} parent=5 // pred_check_branch
      %215 = sbr.rel (%p213) target = $region32
    $region31: #{group_norm.1} parent=5 // pred_region
      // Predicated region
      $region33: #{group_norm.1} parent=31 // pred_check
        %p216 = pneg %p45
      $region34: #{group_norm.1} parent=31 // pred_check_branch
        %218 = sbr.rel (%p216) target = $region36
      $region35: #{group_norm.1} parent=31 // pred_region
        %s219 = smul.u32 8, %s19
        %p220 = scmp.lt.s32.totalorder %s18, 1
        %s221 = scalar_select %p220, %s18, 1
        %p222 = scmp.lt.s32.totalorder %s219, 7
        %s223 = scalar_select %p222, %s219, 7
        %s224 = smul.addr %s223, 2
        %s225 = smul.addr %s221, 16
        %s226 = sadd.s32 %s224, %s225
        %s227 = smul.addr %s226, 8
        %s228 = scalar_lea.vmem %s0, %s227
        %s229 = smul.u32 8, %s19
      $region36: #{group_norm.1} parent=31 // pred_fallthru
        _
    $region32: #{group_norm.1} parent=5 // pred_fallthru
      _
    %p230 = scmp.le.s32.totalorder 1, %s11
    %p231 = scmp.lt.s32.totalorder %s11, 3
    %p232 = pnand %p230, %p231
    %p233 = pneg %p232
    // Predicated region
    $region37: #{group_norm.1} parent=5 // pred_check
      _
    $region38: #{group_norm.1} parent=5 // pred_check_branch
      %235 = sbr.rel (%p232) target = $region40
    $region39: #{group_norm.1} parent=5 // pred_region
      %s236 = ssub.s32 %s11, 1
      %s237 = smul.u32 8, %s21
      %p238 = scmp.lt.s32.totalorder %s20, 1
      %s239 = scalar_select %p238, %s20, 1
      %p240 = scmp.lt.s32.totalorder %s237, 7
      %s241 = scalar_select %p240, %s237, 7
      %s242 = smul.addr %s241, 2
      %s243 = smul.addr %s239, 16
      %s244 = sadd.s32 %s242, %s243
      %s245 = smul.addr %s244, 8
      %s246 = scalar_lea.vmem %s0, %s245
      %p247 = pneg %p51
      %p248 = pneg %p48
      %s249 = smul.u32 8, %s21
      %p250 = scmp.lt.s32.totalorder %s249, 7
      %s251 = scalar_select %p250, %s249, 7
      %s252 = smul.addr %s251, 8
      %s253 = scalar_lea.vmem %s1, %s252
      %p254 = pneg %p77
      %p255 = pneg %p74
      %s256 = smul.u32 8, %s21
      %p257 = scmp.lt.s32.totalorder %s256, 7
      %s258 = scalar_select %p257, %s256, 7
      %s259 = smul.addr %s258, 8
      %s260 = scalar_lea.vmem %s2, %s259
      %p261 = pneg %p103
      %p262 = pneg %p100
      %p263 = pneg %p124
      %p264 = pneg %p121
      %p265 = pneg %p145
      %p266 = pneg %p142
      %p267 = pneg %p173
      %p268 = pneg %p170
      %s269 = smul.u32 8, %s21
      %p270 = scmp.lt.s32.totalorder %s20, 1
      %s271 = scalar_select %p270, %s20, 1
      %p272 = scmp.lt.s32.totalorder %s269, 7
      %s273 = scalar_select %p272, %s269, 7
      %s274 = smul.addr %s273, 2
      %s275 = smul.addr %s271, 16
      %s276 = sadd.s32 %s274, %s275
      %s277 = smul.addr %s276, 8
      %s278 = scalar_lea.vmem %s5, %s277
      %s279 = smul.u32 8, %s21
      %p280 = scmp.lt.s32.totalorder %s20, 1
      %s281 = scalar_select %p280, %s20, 1
      %p282 = scmp.lt.s32.totalorder %s279, 7
      %s283 = scalar_select %p282, %s279, 7
      %s284 = smul.addr %s283, 2
      %s285 = smul.addr %s281, 16
      %s286 = sadd.s32 %s284, %s285
      %s287 = smul.addr %s286, 8
      %s288 = scalar_lea.vmem %s0, %s287
      %s289 = smul.u32 8, %s21
      %s290 = smul.u32 8, %s21
      %p291 = scmp.lt.s32.totalorder %s290, 7
      %s292 = scalar_select %p291, %s290, 7
      %s293 = smul.addr %s292, 8
      %s294 = scalar_lea.vmem %s1, %s293
      %s295 = smul.u32 8, %s21
      %s296 = smul.u32 8, %s21
      %p297 = scmp.lt.s32.totalorder %s296, 7
      %s298 = scalar_select %p297, %s296, 7
      %s299 = smul.addr %s298, 8
      %s300 = scalar_lea.vmem %s2, %s299
      %s301 = smul.u32 8, %s21
      %s302 = smul.u32 8, %s21
      %p303 = scmp.lt.s32.totalorder %s20, 1
      %s304 = scalar_select %p303, %s20, 1
      %p305 = scmp.lt.s32.totalorder %s302, 7
      %s306 = scalar_select %p305, %s302, 7
      %s307 = smul.addr %s306, 2
      %s308 = smul.addr %s304, 16
      %s309 = sadd.s32 %s307, %s308
      %s310 = smul.addr %s309, 8
      %s311 = scalar_lea.vmem %s5, %s310
      %s312 = smul.u32 8, %s21
      %v313 = vld [vmem:[%s288] sm:$0xff]
      %v314 = vld [vmem:[%s288 + $0x8] sm:$0xff]
      %v315 = vld [vmem:[%s288 + $0x10] sm:$0xff]
      %v316 = vld [vmem:[%s288 + $0x18] sm:$0xff]
      %v317 = vld [vmem:[%s288 + $0x20] sm:$0xff]
      %v318 = vld [vmem:[%s288 + $0x28] sm:$0xff]
      %v319 = vld [vmem:[%s288 + $0x30] sm:$0xff]
      %v320 = vld [vmem:[%s288 + $0x38] sm:$0xff]
      %v321 = vld [vmem:[%s288 + $0x40] sm:$0xff]
      %v322 = vld [vmem:[%s288 + $0x48] sm:$0xff]
      %v323 = vld [vmem:[%s288 + $0x50] sm:$0xff]
      %v324 = vld [vmem:[%s288 + $0x58] sm:$0xff]
      %v325 = vld [vmem:[%s288 + $0x60] sm:$0xff]
      %v326 = vld [vmem:[%s288 + $0x68] sm:$0xff]
      %v327 = vld [vmem:[%s288 + $0x70] sm:$0xff]
      %v328 = vld [vmem:[%s288 + $0x78] sm:$0xff]
      %v329 = vld [vmem:[%s3] sm:$0xff]
      %v330 = vld [vmem:[%s3 + $0x8] sm:$0xff]
      %v331 = vld [vmem:[%s3 + $0x10] sm:$0xff]
      %v332 = vld [vmem:[%s3 + $0x18] sm:$0xff]
      %v333 = vld [vmem:[%s4] sm:$0xff]
      %v334 = vld [vmem:[%s4 + $0x8] sm:$0xff]
      %v335 = vld [vmem:[%s4 + $0x10] sm:$0xff]
      %v336 = vld [vmem:[%s4 + $0x18] sm:$0xff]
      %v337 = vld [vmem:[%s4 + $0x20] sm:$0xff]
      %v338 = vld [vmem:[%s4 + $0x28] sm:$0xff]
      %v339 = vld [vmem:[%s4 + $0x30] sm:$0xff]
      %v340 = vld [vmem:[%s4 + $0x38] sm:$0xff]
      %v341 = vadd.f32 %v313, %v314
      %342 = vadd.xlane.f32.xlu0 %v341
      %v343 = vpop.xlane.xlu0 %342
      %v344 = vadd.f32 %v315, %v316
      %345 = vadd.xlane.f32.xlu0 %v344
      %v346 = vpop.xlane.xlu0 %345
      %v347 = vadd.f32 %v317, %v318
      %348 = vadd.xlane.f32.xlu0 %v347
      %v349 = vpop.xlane.xlu0 %348
      %v350 = vadd.f32 %v319, %v320
      %351 = vadd.xlane.f32.xlu0 %v350
      %v352 = vpop.xlane.xlu0 %351
      %v353 = vadd.f32 %v321, %v322
      %354 = vadd.xlane.f32.xlu0 %v353
      %v355 = vpop.xlane.xlu0 %354
      %v356 = vadd.f32 %v323, %v324
      %357 = vadd.xlane.f32.xlu0 %v356
      %v358 = vpop.xlane.xlu0 %357
      %v359 = vadd.f32 %v325, %v326
      %360 = vadd.xlane.f32.xlu0 %v359
      %v361 = vpop.xlane.xlu0 %360
      %v362 = vadd.f32 %v327, %v328
      %363 = vadd.xlane.f32.xlu0 %v362
      %v364 = vpop.xlane.xlu0 %363
      %vm365 = vcmask 523264
      %v367 = vsel %vm365, %v329, 0
      %v370 = vsel %vm365, %v330, 0
      %v373 = vsel %vm365, %v331, 0
      %v376 = vsel %vm365, %v332, 0
      %378 = vmatpush.msra.mxu0 0.0
      %379 = vmatpush.msra.mxu0 0.0
      %380 = vmatpush.msra.mxu0 0.0
      %381 = vmatpush.msra.mxu0 0.0
      %382 = vmatpush.msra.mxu0 0.0
      %383 = vmatpush.msra.mxu0 0.0
      %384 = vmatpush.msra.mxu0 0.0
      %385 = vmatpush.msra.mxu0 0.0
      %v386 = vand.u32 %v364, 4294901760
      %387 = vmatpush.msra.mxu0 %v386
      %v388 = vand.u32 %v361, 4294901760
      %389 = vmatpush.msra.mxu0 %v388
      %v390 = vand.u32 %v358, 4294901760
      %391 = vmatpush.msra.mxu0 %v390
      %v392 = vand.u32 %v355, 4294901760
      %393 = vmatpush.msra.mxu0 %v392
      %v394 = vand.u32 %v352, 4294901760
      %395 = vmatpush.msra.mxu0 %v394
      %v396 = vand.u32 %v349, 4294901760
      %397 = vmatpush.msra.mxu0 %v396
      %v398 = vand.u32 %v346, 4294901760
      %399 = vmatpush.msra.mxu0 %v398
      %v400 = vand.u32 %v343, 4294901760
      %401 = vmatpush.msra.mxu0 %v400
      %v402 = vand.u32 %v367, 4294901760
      %v403 = vsub.f32 %v367, %v402
      %v404 = vand.u32 %v403, 4294901760
      %v405 = vsub.f32 %v403, %v404
      %v406 = vand.u32 %v405, 4294901760
      %407 = vmatmul.f32.gmra.mxu0 %v406
      %v408 = vpop.f32.mrf.mxu0
      %v409 = vadd.f32 0.0, %v408
      %v410 = vand.u32 %v370, 4294901760
      %v411 = vsub.f32 %v370, %v410
      %v412 = vand.u32 %v411, 4294901760
      %v413 = vsub.f32 %v411, %v412
      %v414 = vand.u32 %v413, 4294901760
      %415 = vmatmul.f32.gmra.mxu0 %v414
      %v416 = vpop.f32.mrf.mxu0
      %v417 = vadd.f32 0.0, %v416
      %v418 = vand.u32 %v373, 4294901760
      %v419 = vsub.f32 %v373, %v418
      %v420 = vand.u32 %v419, 4294901760
      %v421 = vsub.f32 %v419, %v420
      %v422 = vand.u32 %v421, 4294901760
      %423 = vmatmul.f32.gmra.mxu0 %v422
      %v424 = vpop.f32.mrf.mxu0
      %v425 = vadd.f32 0.0, %v424
      %v426 = vand.u32 %v376, 4294901760
      %v427 = vsub.f32 %v376, %v426
      %v428 = vand.u32 %v427, 4294901760
      %v429 = vsub.f32 %v427, %v428
      %v430 = vand.u32 %v429, 4294901760
      %431 = vmatmul.f32.gmra.mxu0 %v430
      %v432 = vpop.f32.mrf.mxu0
      %v433 = vadd.f32 0.0, %v432
      %434 = vdwg.mxu0
      %435 = vmatpush.msra.mxu0 0.0
      %436 = vmatpush.msra.mxu0 0.0
      %437 = vmatpush.msra.mxu0 0.0
      %438 = vmatpush.msra.mxu0 0.0
      %439 = vmatpush.msra.mxu0 0.0
      %440 = vmatpush.msra.mxu0 0.0
      %441 = vmatpush.msra.mxu0 0.0
      %442 = vmatpush.msra.mxu0 0.0
      %v443 = vand.u32 %v364, 4294901760
      %v444 = vsub.f32 %v364, %v443
      %v445 = vand.u32 %v444, 4294901760
      %v446 = vsub.f32 %v444, %v445
      %v447 = vand.u32 %v446, 4294901760
      %448 = vmatpush.msra.mxu0 %v447
      %v449 = vand.u32 %v361, 4294901760
      %v450 = vsub.f32 %v361, %v449
      %v451 = vand.u32 %v450, 4294901760
      %v452 = vsub.f32 %v450, %v451
      %v453 = vand.u32 %v452, 4294901760
      %454 = vmatpush.msra.mxu0 %v453
      %v455 = vand.u32 %v358, 4294901760
      %v456 = vsub.f32 %v358, %v455
      %v457 = vand.u32 %v456, 4294901760
      %v458 = vsub.f32 %v456, %v457
      %v459 = vand.u32 %v458, 4294901760
      %460 = vmatpush.msra.mxu0 %v459
      %v461 = vand.u32 %v355, 4294901760
      %v462 = vsub.f32 %v355, %v461
      %v463 = vand.u32 %v462, 4294901760
      %v464 = vsub.f32 %v462, %v463
      %v465 = vand.u32 %v464, 4294901760
      %466 = vmatpush.msra.mxu0 %v465
      %v467 = vand.u32 %v352, 4294901760
      %v468 = vsub.f32 %v352, %v467
      %v469 = vand.u32 %v468, 4294901760
      %v470 = vsub.f32 %v468, %v469
      %v471 = vand.u32 %v470, 4294901760
      %472 = vmatpush.msra.mxu0 %v471
      %v473 = vand.u32 %v349, 4294901760
      %v474 = vsub.f32 %v349, %v473
      %v475 = vand.u32 %v474, 4294901760
      %v476 = vsub.f32 %v474, %v475
      %v477 = vand.u32 %v476, 4294901760
      %478 = vmatpush.msra.mxu0 %v477
      %v479 = vand.u32 %v346, 4294901760
      %v480 = vsub.f32 %v346, %v479
      %v481 = vand.u32 %v480, 4294901760
      %v482 = vsub.f32 %v480, %v481
      %v483 = vand.u32 %v482, 4294901760
      %484 = vmatpush.msra.mxu0 %v483
      %v485 = vand.u32 %v343, 4294901760
      %v486 = vsub.f32 %v343, %v485
      %v487 = vand.u32 %v486, 4294901760
      %v488 = vsub.f32 %v486, %v487
      %v489 = vand.u32 %v488, 4294901760
      %490 = vmatpush.msra.mxu0 %v489
      %v491 = vand.u32 %v367, 4294901760
      %492 = vmatmul.f32.gmra.mxu0 %v491
      %v493 = vpop.f32.mrf.mxu0
      %v494 = vadd.f32 %v409, %v493
      %v495 = vand.u32 %v370, 4294901760
      %496 = vmatmul.f32.gmra.mxu0 %v495
      %v497 = vpop.f32.mrf.mxu0
      %v498 = vadd.f32 %v417, %v497
      %v499 = vand.u32 %v373, 4294901760
      %500 = vmatmul.f32.gmra.mxu0 %v499
      %v501 = vpop.f32.mrf.mxu0
      %v502 = vadd.f32 %v425, %v501
      %v503 = vand.u32 %v376, 4294901760
      %504 = vmatmul.f32.gmra.mxu0 %v503
      %v505 = vpop.f32.mrf.mxu0
      %v506 = vadd.f32 %v433, %v505
      %507 = vdwg.mxu0
      %508 = vmatpush.msra.mxu0 0.0
      %509 = vmatpush.msra.mxu0 0.0
      %510 = vmatpush.msra.mxu0 0.0
      %511 = vmatpush.msra.mxu0 0.0
      %512 = vmatpush.msra.mxu0 0.0
      %513 = vmatpush.msra.mxu0 0.0
      %514 = vmatpush.msra.mxu0 0.0
      %515 = vmatpush.msra.mxu0 0.0
      %v516 = vand.u32 %v364, 4294901760
      %v517 = vsub.f32 %v364, %v516
      %518 = vmatpush.msra.mxu0 %v517
      %v519 = vand.u32 %v361, 4294901760
      %v520 = vsub.f32 %v361, %v519
      %521 = vmatpush.msra.mxu0 %v520
      %v522 = vand.u32 %v358, 4294901760
      %v523 = vsub.f32 %v358, %v522
      %524 = vmatpush.msra.mxu0 %v523
      %v525 = vand.u32 %v355, 4294901760
      %v526 = vsub.f32 %v355, %v525
      %527 = vmatpush.msra.mxu0 %v526
      %v528 = vand.u32 %v352, 4294901760
      %v529 = vsub.f32 %v352, %v528
      %530 = vmatpush.msra.mxu0 %v529
      %v531 = vand.u32 %v349, 4294901760
      %v532 = vsub.f32 %v349, %v531
      %533 = vmatpush.msra.mxu0 %v532
      %v534 = vand.u32 %v346, 4294901760
      %v535 = vsub.f32 %v346, %v534
      %536 = vmatpush.msra.mxu0 %v535
      %v537 = vand.u32 %v343, 4294901760
      %v538 = vsub.f32 %v343, %v537
      %539 = vmatpush.msra.mxu0 %v538
      %v540 = vand.u32 %v367, 4294901760
      %v541 = vsub.f32 %v367, %v540
      %542 = vmatmul.f32.gmra.mxu0 %v541
      %v543 = vpop.f32.mrf.mxu0
      %v544 = vadd.f32 %v494, %v543
      %v545 = vand.u32 %v370, 4294901760
      %v546 = vsub.f32 %v370, %v545
      %547 = vmatmul.f32.gmra.mxu0 %v546
      %v548 = vpop.f32.mrf.mxu0
      %v549 = vadd.f32 %v498, %v548
      %v550 = vand.u32 %v373, 4294901760
      %v551 = vsub.f32 %v373, %v550
      %552 = vmatmul.f32.gmra.mxu0 %v551
      %v553 = vpop.f32.mrf.mxu0
      %v554 = vadd.f32 %v502, %v553
      %v555 = vand.u32 %v376, 4294901760
      %v556 = vsub.f32 %v376, %v555
      %557 = vmatmul.f32.gmra.mxu0 %v556
      %v558 = vpop.f32.mrf.mxu0
      %v559 = vadd.f32 %v506, %v558
      %560 = vdwg.mxu0
      %561 = vmatpush.msra.mxu0 0.0
      %562 = vmatpush.msra.mxu0 0.0
      %563 = vmatpush.msra.mxu0 0.0
      %564 = vmatpush.msra.mxu0 0.0
      %565 = vmatpush.msra.mxu0 0.0
      %566 = vmatpush.msra.mxu0 0.0
      %567 = vmatpush.msra.mxu0 0.0
      %568 = vmatpush.msra.mxu0 0.0
      %v569 = vand.u32 %v364, 4294901760
      %570 = vmatpush.msra.mxu0 %v569
      %v571 = vand.u32 %v361, 4294901760
      %572 = vmatpush.msra.mxu0 %v571
      %v573 = vand.u32 %v358, 4294901760
      %574 = vmatpush.msra.mxu0 %v573
      %v575 = vand.u32 %v355, 4294901760
      %576 = vmatpush.msra.mxu0 %v575
      %v577 = vand.u32 %v352, 4294901760
      %578 = vmatpush.msra.mxu0 %v577
      %v579 = vand.u32 %v349, 4294901760
      %580 = vmatpush.msra.mxu0 %v579
      %v581 = vand.u32 %v346, 4294901760
      %582 = vmatpush.msra.mxu0 %v581
      %v583 = vand.u32 %v343, 4294901760
      %584 = vmatpush.msra.mxu0 %v583
      %v585 = vand.u32 %v367, 4294901760
      %v586 = vsub.f32 %v367, %v585
      %v587 = vand.u32 %v586, 4294901760
      %588 = vmatmul.f32.gmra.mxu0 %v587
      %v589 = vpop.f32.mrf.mxu0
      %v590 = vadd.f32 %v544, %v589
      %v591 = vand.u32 %v370, 4294901760
      %v592 = vsub.f32 %v370, %v591
      %v593 = vand.u32 %v592, 4294901760
      %594 = vmatmul.f32.gmra.mxu0 %v593
      %v595 = vpop.f32.mrf.mxu0
      %v596 = vadd.f32 %v549, %v595
      %v597 = vand.u32 %v373, 4294901760
      %v598 = vsub.f32 %v373, %v597
      %v599 = vand.u32 %v598, 4294901760
      %600 = vmatmul.f32.gmra.mxu0 %v599
      %v601 = vpop.f32.mrf.mxu0
      %v602 = vadd.f32 %v554, %v601
      %v603 = vand.u32 %v376, 4294901760
      %v604 = vsub.f32 %v376, %v603
      %v605 = vand.u32 %v604, 4294901760
      %606 = vmatmul.f32.gmra.mxu0 %v605
      %v607 = vpop.f32.mrf.mxu0
      %v608 = vadd.f32 %v559, %v607
      %609 = vdwg.mxu0
      %610 = vmatpush.msra.mxu0 0.0
      %611 = vmatpush.msra.mxu0 0.0
      %612 = vmatpush.msra.mxu0 0.0
      %613 = vmatpush.msra.mxu0 0.0
      %614 = vmatpush.msra.mxu0 0.0
      %615 = vmatpush.msra.mxu0 0.0
      %616 = vmatpush.msra.mxu0 0.0
      %617 = vmatpush.msra.mxu0 0.0
      %v618 = vand.u32 %v364, 4294901760
      %v619 = vsub.f32 %v364, %v618
      %v620 = vand.u32 %v619, 4294901760
      %621 = vmatpush.msra.mxu0 %v620
      %v622 = vand.u32 %v361, 4294901760
      %v623 = vsub.f32 %v361, %v622
      %v624 = vand.u32 %v623, 4294901760
      %625 = vmatpush.msra.mxu0 %v624
      %v626 = vand.u32 %v358, 4294901760
      %v627 = vsub.f32 %v358, %v626
      %v628 = vand.u32 %v627, 4294901760
      %629 = vmatpush.msra.mxu0 %v628
      %v630 = vand.u32 %v355, 4294901760
      %v631 = vsub.f32 %v355, %v630
      %v632 = vand.u32 %v631, 4294901760
      %633 = vmatpush.msra.mxu0 %v632
      %v634 = vand.u32 %v352, 4294901760
      %v635 = vsub.f32 %v352, %v634
      %v636 = vand.u32 %v635, 4294901760
      %637 = vmatpush.msra.mxu0 %v636
      %v638 = vand.u32 %v349, 4294901760
      %v639 = vsub.f32 %v349, %v638
      %v640 = vand.u32 %v639, 4294901760
      %641 = vmatpush.msra.mxu0 %v640
      %v642 = vand.u32 %v346, 4294901760
      %v643 = vsub.f32 %v346, %v642
      %v644 = vand.u32 %v643, 4294901760
      %645 = vmatpush.msra.mxu0 %v644
      %v646 = vand.u32 %v343, 4294901760
      %v647 = vsub.f32 %v343, %v646
      %v648 = vand.u32 %v647, 4294901760
      %649 = vmatpush.msra.mxu0 %v648
      %v650 = vand.u32 %v367, 4294901760
      %651 = vmatmul.f32.gmra.mxu0 %v650
      %v652 = vpop.f32.mrf.mxu0
      %v653 = vadd.f32 %v590, %v652
      %v654 = vand.u32 %v370, 4294901760
      %655 = vmatmul.f32.gmra.mxu0 %v654
      %v656 = vpop.f32.mrf.mxu0
      %v657 = vadd.f32 %v596, %v656
      %v658 = vand.u32 %v373, 4294901760
      %659 = vmatmul.f32.gmra.mxu0 %v658
      %v660 = vpop.f32.mrf.mxu0
      %v661 = vadd.f32 %v602, %v660
      %v662 = vand.u32 %v376, 4294901760
      %663 = vmatmul.f32.gmra.mxu0 %v662
      %v664 = vpop.f32.mrf.mxu0
      %v665 = vadd.f32 %v608, %v664
      %666 = vdwg.mxu0
      %667 = vmatpush.msra.mxu0 0.0
      %668 = vmatpush.msra.mxu0 0.0
      %669 = vmatpush.msra.mxu0 0.0
      %670 = vmatpush.msra.mxu0 0.0
      %671 = vmatpush.msra.mxu0 0.0
      %672 = vmatpush.msra.mxu0 0.0
      %673 = vmatpush.msra.mxu0 0.0
      %674 = vmatpush.msra.mxu0 0.0
      %v675 = vand.u32 %v364, 4294901760
      %676 = vmatpush.msra.mxu0 %v675
      %v677 = vand.u32 %v361, 4294901760
      %678 = vmatpush.msra.mxu0 %v677
      %v679 = vand.u32 %v358, 4294901760
      %680 = vmatpush.msra.mxu0 %v679
      %v681 = vand.u32 %v355, 4294901760
      %682 = vmatpush.msra.mxu0 %v681
      %v683 = vand.u32 %v352, 4294901760
      %684 = vmatpush.msra.mxu0 %v683
      %v685 = vand.u32 %v349, 4294901760
      %686 = vmatpush.msra.mxu0 %v685
      %v687 = vand.u32 %v346, 4294901760
      %688 = vmatpush.msra.mxu0 %v687
      %v689 = vand.u32 %v343, 4294901760
      %690 = vmatpush.msra.mxu0 %v689
      %v691 = vand.u32 %v367, 4294901760
      %692 = vmatmul.f32.gmra.mxu0 %v691
      %v693 = vpop.f32.mrf.mxu0
      %v694 = vadd.f32 %v653, %v693
      %v695 = vand.u32 %v370, 4294901760
      %696 = vmatmul.f32.gmra.mxu0 %v695
      %v697 = vpop.f32.mrf.mxu0
      %v698 = vadd.f32 %v657, %v697
      %v699 = vand.u32 %v373, 4294901760
      %700 = vmatmul.f32.gmra.mxu0 %v699
      %v701 = vpop.f32.mrf.mxu0
      %v702 = vadd.f32 %v661, %v701
      %v703 = vand.u32 %v376, 4294901760
      %704 = vmatmul.f32.gmra.mxu0 %v703
      %v705 = vpop.f32.mrf.mxu0
      %v706 = vadd.f32 %v665, %v705
      %707 = vdwg.mxu0
      %v708 = vmul.f32 %v694, 0.001953125
      %v709 = vmul.f32 %v698, 0.001953125
      %v710 = vmul.f32 %v702, 0.001953125
      %v711 = vmul.f32 %v706, 0.001953125
      %vm712 = vcmask 261120
      %v714 = vsel %vm712, %v333, 0
      %v717 = vsel %vm712, %v334, 0
      %v720 = vsel %vm712, %v335, 0
      %v723 = vsel %vm712, %v336, 0
      %v726 = vsel %vm712, %v337, 0
      %v729 = vsel %vm712, %v338, 0
      %v732 = vsel %vm712, %v339, 0
      %v735 = vsel %vm712, %v340, 0
      %737 = vmatpush.msra.mxu0 0.0
      %738 = vmatpush.msra.mxu0 0.0
      %739 = vmatpush.msra.mxu0 0.0
      %740 = vmatpush.msra.mxu0 0.0
      %741 = vmatpush.msra.mxu0 0.0
      %742 = vmatpush.msra.mxu0 0.0
      %743 = vmatpush.msra.mxu0 0.0
      %744 = vmatpush.msra.mxu0 0.0
      %745 = vmatpush.msra.mxu0 0.0
      %746 = vmatpush.msra.mxu0 0.0
      %747 = vmatpush.msra.mxu0 0.0
      %748 = vmatpush.msra.mxu0 0.0
      %v749 = vand.u32 %v711, 4294901760
      %750 = vmatpush.msra.mxu0 %v749
      %v751 = vand.u32 %v710, 4294901760
      %752 = vmatpush.msra.mxu0 %v751
      %v753 = vand.u32 %v709, 4294901760
      %754 = vmatpush.msra.mxu0 %v753
      %v755 = vand.u32 %v708, 4294901760
      %756 = vmatpush.msra.mxu0 %v755
      %v757 = vand.u32 %v714, 4294901760
      %v758 = vsub.f32 %v714, %v757
      %v759 = vand.u32 %v758, 4294901760
      %v760 = vsub.f32 %v758, %v759
      %v761 = vand.u32 %v760, 4294901760
      %762 = vmatmul.f32.gmra.mxu0 %v761
      %v763 = vpop.f32.mrf.mxu0
      %v764 = vadd.f32 0.0, %v763
      %v765 = vand.u32 %v717, 4294901760
      %v766 = vsub.f32 %v717, %v765
      %v767 = vand.u32 %v766, 4294901760
      %v768 = vsub.f32 %v766, %v767
      %v769 = vand.u32 %v768, 4294901760
      %770 = vmatmul.f32.gmra.mxu0 %v769
      %v771 = vpop.f32.mrf.mxu0
      %v772 = vadd.f32 0.0, %v771
      %v773 = vand.u32 %v720, 4294901760
      %v774 = vsub.f32 %v720, %v773
      %v775 = vand.u32 %v774, 4294901760
      %v776 = vsub.f32 %v774, %v775
      %v777 = vand.u32 %v776, 4294901760
      %778 = vmatmul.f32.gmra.mxu0 %v777
      %v779 = vpop.f32.mrf.mxu0
      %v780 = vadd.f32 0.0, %v779
      %v781 = vand.u32 %v723, 4294901760
      %v782 = vsub.f32 %v723, %v781
      %v783 = vand.u32 %v782, 4294901760
      %v784 = vsub.f32 %v782, %v783
      %v785 = vand.u32 %v784, 4294901760
      %786 = vmatmul.f32.gmra.mxu0 %v785
      %v787 = vpop.f32.mrf.mxu0
      %v788 = vadd.f32 0.0, %v787
      %v789 = vand.u32 %v726, 4294901760
      %v790 = vsub.f32 %v726, %v789
      %v791 = vand.u32 %v790, 4294901760
      %v792 = vsub.f32 %v790, %v791
      %v793 = vand.u32 %v792, 4294901760
      %794 = vmatmul.f32.gmra.mxu0 %v793
      %v795 = vpop.f32.mrf.mxu0
      %v796 = vadd.f32 0.0, %v795
      %v797 = vand.u32 %v729, 4294901760
      %v798 = vsub.f32 %v729, %v797
      %v799 = vand.u32 %v798, 4294901760
      %v800 = vsub.f32 %v798, %v799
      %v801 = vand.u32 %v800, 4294901760
      %802 = vmatmul.f32.gmra.mxu0 %v801
      %v803 = vpop.f32.mrf.mxu0
      %v804 = vadd.f32 0.0, %v803
      %v805 = vand.u32 %v732, 4294901760
      %v806 = vsub.f32 %v732, %v805
      %v807 = vand.u32 %v806, 4294901760
      %v808 = vsub.f32 %v806, %v807
      %v809 = vand.u32 %v808, 4294901760
      %810 = vmatmul.f32.gmra.mxu0 %v809
      %v811 = vpop.f32.mrf.mxu0
      %v812 = vadd.f32 0.0, %v811
      %v813 = vand.u32 %v735, 4294901760
      %v814 = vsub.f32 %v735, %v813
      %v815 = vand.u32 %v814, 4294901760
      %v816 = vsub.f32 %v814, %v815
      %v817 = vand.u32 %v816, 4294901760
      %818 = vmatmul.f32.gmra.mxu0 %v817
      %v819 = vpop.f32.mrf.mxu0
      %v820 = vadd.f32 0.0, %v819
      %821 = vdwg.mxu0
      %822 = vmatpush.msra.mxu0 0.0
      %823 = vmatpush.msra.mxu0 0.0
      %824 = vmatpush.msra.mxu0 0.0
      %825 = vmatpush.msra.mxu0 0.0
      %826 = vmatpush.msra.mxu0 0.0
      %827 = vmatpush.msra.mxu0 0.0
      %828 = vmatpush.msra.mxu0 0.0
      %829 = vmatpush.msra.mxu0 0.0
      %830 = vmatpush.msra.mxu0 0.0
      %831 = vmatpush.msra.mxu0 0.0
      %832 = vmatpush.msra.mxu0 0.0
      %833 = vmatpush.msra.mxu0 0.0
      %v834 = vand.u32 %v711, 4294901760
      %v835 = vsub.f32 %v711, %v834
      %v836 = vand.u32 %v835, 4294901760
      %v837 = vsub.f32 %v835, %v836
      %v838 = vand.u32 %v837, 4294901760
      %839 = vmatpush.msra.mxu0 %v838
      %v840 = vand.u32 %v710, 4294901760
      %v841 = vsub.f32 %v710, %v840
      %v842 = vand.u32 %v841, 4294901760
      %v843 = vsub.f32 %v841, %v842
      %v844 = vand.u32 %v843, 4294901760
      %845 = vmatpush.msra.mxu0 %v844
      %v846 = vand.u32 %v709, 4294901760
      %v847 = vsub.f32 %v709, %v846
      %v848 = vand.u32 %v847, 4294901760
      %v849 = vsub.f32 %v847, %v848
      %v850 = vand.u32 %v849, 4294901760
      %851 = vmatpush.msra.mxu0 %v850
      %v852 = vand.u32 %v708, 4294901760
      %v853 = vsub.f32 %v708, %v852
      %v854 = vand.u32 %v853, 4294901760
      %v855 = vsub.f32 %v853, %v854
      %v856 = vand.u32 %v855, 4294901760
      %857 = vmatpush.msra.mxu0 %v856
      %v858 = vand.u32 %v714, 4294901760
      %859 = vmatmul.f32.gmra.mxu0 %v858
      %v860 = vpop.f32.mrf.mxu0
      %v861 = vadd.f32 %v764, %v860
      %v862 = vand.u32 %v717, 4294901760
      %863 = vmatmul.f32.gmra.mxu0 %v862
      %v864 = vpop.f32.mrf.mxu0
      %v865 = vadd.f32 %v772, %v864
      %v866 = vand.u32 %v720, 4294901760
      %867 = vmatmul.f32.gmra.mxu0 %v866
      %v868 = vpop.f32.mrf.mxu0
      %v869 = vadd.f32 %v780, %v868
      %v870 = vand.u32 %v723, 4294901760
      %871 = vmatmul.f32.gmra.mxu0 %v870
      %v872 = vpop.f32.mrf.mxu0
      %v873 = vadd.f32 %v788, %v872
      %v874 = vand.u32 %v726, 4294901760
      %875 = vmatmul.f32.gmra.mxu0 %v874
      %v876 = vpop.f32.mrf.mxu0
      %v877 = vadd.f32 %v796, %v876
      %v878 = vand.u32 %v729, 4294901760
      %879 = vmatmul.f32.gmra.mxu0 %v878
      %v880 = vpop.f32.mrf.mxu0
      %v881 = vadd.f32 %v804, %v880
      %v882 = vand.u32 %v732, 4294901760
      %883 = vmatmul.f32.gmra.mxu0 %v882
      %v884 = vpop.f32.mrf.mxu0
      %v885 = vadd.f32 %v812, %v884
      %v886 = vand.u32 %v735, 4294901760
      %887 = vmatmul.f32.gmra.mxu0 %v886
      %v888 = vpop.f32.mrf.mxu0
      %v889 = vadd.f32 %v820, %v888
      %890 = vdwg.mxu0
      %891 = vmatpush.msra.mxu0 0.0
      %892 = vmatpush.msra.mxu0 0.0
      %893 = vmatpush.msra.mxu0 0.0
      %894 = vmatpush.msra.mxu0 0.0
      %895 = vmatpush.msra.mxu0 0.0
      %896 = vmatpush.msra.mxu0 0.0
      %897 = vmatpush.msra.mxu0 0.0
      %898 = vmatpush.msra.mxu0 0.0
      %899 = vmatpush.msra.mxu0 0.0
      %900 = vmatpush.msra.mxu0 0.0
      %901 = vmatpush.msra.mxu0 0.0
      %902 = vmatpush.msra.mxu0 0.0
      %v903 = vand.u32 %v711, 4294901760
      %v904 = vsub.f32 %v711, %v903
      %905 = vmatpush.msra.mxu0 %v904
      %v906 = vand.u32 %v710, 4294901760
      %v907 = vsub.f32 %v710, %v906
      %908 = vmatpush.msra.mxu0 %v907
      %v909 = vand.u32 %v709, 4294901760
      %v910 = vsub.f32 %v709, %v909
      %911 = vmatpush.msra.mxu0 %v910
      %v912 = vand.u32 %v708, 4294901760
      %v913 = vsub.f32 %v708, %v912
      %914 = vmatpush.msra.mxu0 %v913
      %v915 = vand.u32 %v714, 4294901760
      %v916 = vsub.f32 %v714, %v915
      %917 = vmatmul.f32.gmra.mxu0 %v916
      %v918 = vpop.f32.mrf.mxu0
      %v919 = vadd.f32 %v861, %v918
      %v920 = vand.u32 %v717, 4294901760
      %v921 = vsub.f32 %v717, %v920
      %922 = vmatmul.f32.gmra.mxu0 %v921
      %v923 = vpop.f32.mrf.mxu0
      %v924 = vadd.f32 %v865, %v923
      %v925 = vand.u32 %v720, 4294901760
      %v926 = vsub.f32 %v720, %v925
      %927 = vmatmul.f32.gmra.mxu0 %v926
      %v928 = vpop.f32.mrf.mxu0
      %v929 = vadd.f32 %v869, %v928
      %v930 = vand.u32 %v723, 4294901760
      %v931 = vsub.f32 %v723, %v930
      %932 = vmatmul.f32.gmra.mxu0 %v931
      %v933 = vpop.f32.mrf.mxu0
      %v934 = vadd.f32 %v873, %v933
      %v935 = vand.u32 %v726, 4294901760
      %v936 = vsub.f32 %v726, %v935
      %937 = vmatmul.f32.gmra.mxu0 %v936
      %v938 = vpop.f32.mrf.mxu0
      %v939 = vadd.f32 %v877, %v938
      %v940 = vand.u32 %v729, 4294901760
      %v941 = vsub.f32 %v729, %v940
      %942 = vmatmul.f32.gmra.mxu0 %v941
      %v943 = vpop.f32.mrf.mxu0
      %v944 = vadd.f32 %v881, %v943
      %v945 = vand.u32 %v732, 4294901760
      %v946 = vsub.f32 %v732, %v945
      %947 = vmatmul.f32.gmra.mxu0 %v946
      %v948 = vpop.f32.mrf.mxu0
      %v949 = vadd.f32 %v885, %v948
      %v950 = vand.u32 %v735, 4294901760
      %v951 = vsub.f32 %v735, %v950
      %952 = vmatmul.f32.gmra.mxu0 %v951
      %v953 = vpop.f32.mrf.mxu0
      %v954 = vadd.f32 %v889, %v953
      %955 = vdwg.mxu0
      %956 = vmatpush.msra.mxu0 0.0
      %957 = vmatpush.msra.mxu0 0.0
      %958 = vmatpush.msra.mxu0 0.0
      %959 = vmatpush.msra.mxu0 0.0
      %960 = vmatpush.msra.mxu0 0.0
      %961 = vmatpush.msra.mxu0 0.0
      %962 = vmatpush.msra.mxu0 0.0
      %963 = vmatpush.msra.mxu0 0.0
      %964 = vmatpush.msra.mxu0 0.0
      %965 = vmatpush.msra.mxu0 0.0
      %966 = vmatpush.msra.mxu0 0.0
      %967 = vmatpush.msra.mxu0 0.0
      %v968 = vand.u32 %v711, 4294901760
      %969 = vmatpush.msra.mxu0 %v968
      %v970 = vand.u32 %v710, 4294901760
      %971 = vmatpush.msra.mxu0 %v970
      %v972 = vand.u32 %v709, 4294901760
      %973 = vmatpush.msra.mxu0 %v972
      %v974 = vand.u32 %v708, 4294901760
      %975 = vmatpush.msra.mxu0 %v974
      %v976 = vand.u32 %v714, 4294901760
      %v977 = vsub.f32 %v714, %v976
      %v978 = vand.u32 %v977, 4294901760
      %979 = vmatmul.f32.gmra.mxu0 %v978
      %v980 = vpop.f32.mrf.mxu0
      %v981 = vadd.f32 %v919, %v980
      %v982 = vand.u32 %v717, 4294901760
      %v983 = vsub.f32 %v717, %v982
      %v984 = vand.u32 %v983, 4294901760
      %985 = vmatmul.f32.gmra.mxu0 %v984
      %v986 = vpop.f32.mrf.mxu0
      %v987 = vadd.f32 %v924, %v986
      %v988 = vand.u32 %v720, 4294901760
      %v989 = vsub.f32 %v720, %v988
      %v990 = vand.u32 %v989, 4294901760
      %991 = vmatmul.f32.gmra.mxu0 %v990
      %v992 = vpop.f32.mrf.mxu0
      %v993 = vadd.f32 %v929, %v992
      %v994 = vand.u32 %v723, 4294901760
      %v995 = vsub.f32 %v723, %v994
      %v996 = vand.u32 %v995, 4294901760
      %997 = vmatmul.f32.gmra.mxu0 %v996
      %v998 = vpop.f32.mrf.mxu0
      %v999 = vadd.f32 %v934, %v998
      %v1000 = vand.u32 %v726, 4294901760
      %v1001 = vsub.f32 %v726, %v1000
      %v1002 = vand.u32 %v1001, 4294901760
      %1003 = vmatmul.f32.gmra.mxu0 %v1002
      %v1004 = vpop.f32.mrf.mxu0
      %v1005 = vadd.f32 %v939, %v1004
      %v1006 = vand.u32 %v729, 4294901760
      %v1007 = vsub.f32 %v729, %v1006
      %v1008 = vand.u32 %v1007, 4294901760
      %1009 = vmatmul.f32.gmra.mxu0 %v1008
      %v1010 = vpop.f32.mrf.mxu0
      %v1011 = vadd.f32 %v944, %v1010
      %v1012 = vand.u32 %v732, 4294901760
      %v1013 = vsub.f32 %v732, %v1012
      %v1014 = vand.u32 %v1013, 4294901760
      %1015 = vmatmul.f32.gmra.mxu0 %v1014
      %v1016 = vpop.f32.mrf.mxu0
      %v1017 = vadd.f32 %v949, %v1016
      %v1018 = vand.u32 %v735, 4294901760
      %v1019 = vsub.f32 %v735, %v1018
      %v1020 = vand.u32 %v1019, 4294901760
      %1021 = vmatmul.f32.gmra.mxu0 %v1020
      %v1022 = vpop.f32.mrf.mxu0
      %v1023 = vadd.f32 %v954, %v1022
      %1024 = vdwg.mxu0
      %1025 = vmatpush.msra.mxu0 0.0
      %1026 = vmatpush.msra.mxu0 0.0
      %1027 = vmatpush.msra.mxu0 0.0
      %1028 = vmatpush.msra.mxu0 0.0
      %1029 = vmatpush.msra.mxu0 0.0
      %1030 = vmatpush.msra.mxu0 0.0
      %1031 = vmatpush.msra.mxu0 0.0
      %1032 = vmatpush.msra.mxu0 0.0
      %1033 = vmatpush.msra.mxu0 0.0
      %1034 = vmatpush.msra.mxu0 0.0
      %1035 = vmatpush.msra.mxu0 0.0
      %1036 = vmatpush.msra.mxu0 0.0
      %v1037 = vand.u32 %v711, 4294901760
      %v1038 = vsub.f32 %v711, %v1037
      %v1039 = vand.u32 %v1038, 4294901760
      %1040 = vmatpush.msra.mxu0 %v1039
      %v1041 = vand.u32 %v710, 4294901760
      %v1042 = vsub.f32 %v710, %v1041
      %v1043 = vand.u32 %v1042, 4294901760
      %1044 = vmatpush.msra.mxu0 %v1043
      %v1045 = vand.u32 %v709, 4294901760
      %v1046 = vsub.f32 %v709, %v1045
      %v1047 = vand.u32 %v1046, 4294901760
      %1048 = vmatpush.msra.mxu0 %v1047
      %v1049 = vand.u32 %v708, 4294901760
      %v1050 = vsub.f32 %v708, %v1049
      %v1051 = vand.u32 %v1050, 4294901760
      %1052 = vmatpush.msra.mxu0 %v1051
      %v1053 = vand.u32 %v714, 4294901760
      %1054 = vmatmul.f32.gmra.mxu0 %v1053
      %v1055 = vpop.f32.mrf.mxu0
      %v1056 = vadd.f32 %v981, %v1055
      %v1057 = vand.u32 %v717, 4294901760
      %1058 = vmatmul.f32.gmra.mxu0 %v1057
      %v1059 = vpop.f32.mrf.mxu0
      %v1060 = vadd.f32 %v987, %v1059
      %v1061 = vand.u32 %v720, 4294901760
      %1062 = vmatmul.f32.gmra.mxu0 %v1061
      %v1063 = vpop.f32.mrf.mxu0
      %v1064 = vadd.f32 %v993, %v1063
      %v1065 = vand.u32 %v723, 4294901760
      %1066 = vmatmul.f32.gmra.mxu0 %v1065
      %v1067 = vpop.f32.mrf.mxu0
      %v1068 = vadd.f32 %v999, %v1067
      %v1069 = vand.u32 %v726, 4294901760
      %1070 = vmatmul.f32.gmra.mxu0 %v1069
      %v1071 = vpop.f32.mrf.mxu0
      %v1072 = vadd.f32 %v1005, %v1071
      %v1073 = vand.u32 %v729, 4294901760
      %1074 = vmatmul.f32.gmra.mxu0 %v1073
      %v1075 = vpop.f32.mrf.mxu0
      %v1076 = vadd.f32 %v1011, %v1075
      %v1077 = vand.u32 %v732, 4294901760
      %1078 = vmatmul.f32.gmra.mxu0 %v1077
      %v1079 = vpop.f32.mrf.mxu0
      %v1080 = vadd.f32 %v1017, %v1079
      %v1081 = vand.u32 %v735, 4294901760
      %1082 = vmatmul.f32.gmra.mxu0 %v1081
      %v1083 = vpop.f32.mrf.mxu0
      %v1084 = vadd.f32 %v1023, %v1083
      %1085 = vdwg.mxu0
      %1086 = vmatpush.msra.mxu0 0.0
      %1087 = vmatpush.msra.mxu0 0.0
      %1088 = vmatpush.msra.mxu0 0.0
      %1089 = vmatpush.msra.mxu0 0.0
      %1090 = vmatpush.msra.mxu0 0.0
      %1091 = vmatpush.msra.mxu0 0.0
      %1092 = vmatpush.msra.mxu0 0.0
      %1093 = vmatpush.msra.mxu0 0.0
      %1094 = vmatpush.msra.mxu0 0.0
      %1095 = vmatpush.msra.mxu0 0.0
      %1096 = vmatpush.msra.mxu0 0.0
      %1097 = vmatpush.msra.mxu0 0.0
      %v1098 = vand.u32 %v711, 4294901760
      %1099 = vmatpush.msra.mxu0 %v1098
      %v1100 = vand.u32 %v710, 4294901760
      %1101 = vmatpush.msra.mxu0 %v1100
      %v1102 = vand.u32 %v709, 4294901760
      %1103 = vmatpush.msra.mxu0 %v1102
      %v1104 = vand.u32 %v708, 4294901760
      %1105 = vmatpush.msra.mxu0 %v1104
      %v1106 = vand.u32 %v714, 4294901760
      %1107 = vmatmul.f32.gmra.mxu0 %v1106
      %v1108 = vpop.f32.mrf.mxu0
      %v1109 = vadd.f32 %v1056, %v1108
      %v1110 = vand.u32 %v717, 4294901760
      %1111 = vmatmul.f32.gmra.mxu0 %v1110
      %v1112 = vpop.f32.mrf.mxu0
      %v1113 = vadd.f32 %v1060, %v1112
      %v1114 = vand.u32 %v720, 4294901760
      %1115 = vmatmul.f32.gmra.mxu0 %v1114
      %v1116 = vpop.f32.mrf.mxu0
      %v1117 = vadd.f32 %v1064, %v1116
      %v1118 = vand.u32 %v723, 4294901760
      %1119 = vmatmul.f32.gmra.mxu0 %v1118
      %v1120 = vpop.f32.mrf.mxu0
      %v1121 = vadd.f32 %v1068, %v1120
      %v1122 = vand.u32 %v726, 4294901760
      %1123 = vmatmul.f32.gmra.mxu0 %v1122
      %v1124 = vpop.f32.mrf.mxu0
      %v1125 = vadd.f32 %v1072, %v1124
      %v1126 = vand.u32 %v729, 4294901760
      %1127 = vmatmul.f32.gmra.mxu0 %v1126
      %v1128 = vpop.f32.mrf.mxu0
      %v1129 = vadd.f32 %v1076, %v1128
      %v1130 = vand.u32 %v732, 4294901760
      %1131 = vmatmul.f32.gmra.mxu0 %v1130
      %v1132 = vpop.f32.mrf.mxu0
      %v1133 = vadd.f32 %v1080, %v1132
      %v1134 = vand.u32 %v735, 4294901760
      %1135 = vmatmul.f32.gmra.mxu0 %v1134
      %v1136 = vpop.f32.mrf.mxu0
      %v1137 = vadd.f32 %v1084, %v1136
      %1138 = vdwg.mxu0
      %1140 = vset.pattern.permute.xlu0 0
      %1141 = vperm.xlu0 %1140, %v1109
      %v1142 = vpop.permute.xlu0 %1141
      %1145 = vset.pattern.permute.xlu0 0
      %1146 = vperm.xlu0 %1145, %v1113
      %v1147 = vpop.permute.xlu0 %1146
      %1150 = vset.pattern.permute.xlu0 0
      %1151 = vperm.xlu0 %1150, %v1117
      %v1152 = vpop.permute.xlu0 %1151
      %1155 = vset.pattern.permute.xlu0 0
      %1156 = vperm.xlu0 %1155, %v1121
      %v1157 = vpop.permute.xlu0 %1156
      %1160 = vset.pattern.permute.xlu0 0
      %1161 = vperm.xlu0 %1160, %v1125
      %v1162 = vpop.permute.xlu0 %1161
      %1165 = vset.pattern.permute.xlu0 0
      %1166 = vperm.xlu0 %1165, %v1129
      %v1167 = vpop.permute.xlu0 %1166
      %1170 = vset.pattern.permute.xlu0 0
      %1171 = vperm.xlu0 %1170, %v1133
      %v1172 = vpop.permute.xlu0 %1171
      %1175 = vset.pattern.permute.xlu0 0
      %1176 = vperm.xlu0 %1175, %v1137
      %v1177 = vpop.permute.xlu0 %1176
      %v1179 = vsub.f32 %v313, %v1142
      %v1180 = vsub.f32 %v314, %v1142
      %v1181 = vsub.f32 %v315, %v1147
      %v1182 = vsub.f32 %v316, %v1147
      %v1183 = vsub.f32 %v317, %v1152
      %v1184 = vsub.f32 %v318, %v1152
      %v1185 = vsub.f32 %v319, %v1157
      %v1186 = vsub.f32 %v320, %v1157
      %v1187 = vsub.f32 %v321, %v1162
      %v1188 = vsub.f32 %v322, %v1162
      %v1189 = vsub.f32 %v323, %v1167
      %v1190 = vsub.f32 %v324, %v1167
      %v1191 = vsub.f32 %v325, %v1172
      %v1192 = vsub.f32 %v326, %v1172
      %v1193 = vsub.f32 %v327, %v1177
      %v1194 = vsub.f32 %v328, %v1177
      %v1195 = vmul.f32 %v1179, %v1179
      %v1196 = vmul.f32 %v1180, %v1180
      %v1197 = vmul.f32 %v1181, %v1181
      %v1198 = vmul.f32 %v1182, %v1182
      %v1199 = vmul.f32 %v1183, %v1183
      %v1200 = vmul.f32 %v1184, %v1184
      %v1201 = vmul.f32 %v1185, %v1185
      %v1202 = vmul.f32 %v1186, %v1186
      %v1203 = vmul.f32 %v1187, %v1187
      %v1204 = vmul.f32 %v1188, %v1188
      %v1205 = vmul.f32 %v1189, %v1189
      %v1206 = vmul.f32 %v1190, %v1190
      %v1207 = vmul.f32 %v1191, %v1191
      %v1208 = vmul.f32 %v1192, %v1192
      %v1209 = vmul.f32 %v1193, %v1193
      %v1210 = vmul.f32 %v1194, %v1194
      %v1211 = vadd.f32 %v1195, %v1196
      %1212 = vadd.xlane.f32.xlu0 %v1211
      %v1213 = vpop.xlane.xlu0 %1212
      %v1214 = vadd.f32 %v1197, %v1198
      %1215 = vadd.xlane.f32.xlu0 %v1214
      %v1216 = vpop.xlane.xlu0 %1215
      %v1217 = vadd.f32 %v1199, %v1200
      %1218 = vadd.xlane.f32.xlu0 %v1217
      %v1219 = vpop.xlane.xlu0 %1218
      %v1220 = vadd.f32 %v1201, %v1202
      %1221 = vadd.xlane.f32.xlu0 %v1220
      %v1222 = vpop.xlane.xlu0 %1221
      %v1223 = vadd.f32 %v1203, %v1204
      %1224 = vadd.xlane.f32.xlu0 %v1223
      %v1225 = vpop.xlane.xlu0 %1224
      %v1226 = vadd.f32 %v1205, %v1206
      %1227 = vadd.xlane.f32.xlu0 %v1226
      %v1228 = vpop.xlane.xlu0 %1227
      %v1229 = vadd.f32 %v1207, %v1208
      %1230 = vadd.xlane.f32.xlu0 %v1229
      %v1231 = vpop.xlane.xlu0 %1230
      %v1232 = vadd.f32 %v1209, %v1210
      %1233 = vadd.xlane.f32.xlu0 %v1232
      %v1234 = vpop.xlane.xlu0 %1233
      %1235 = vmatpush.msra.mxu0 0.0
      %1236 = vmatpush.msra.mxu0 0.0
      %1237 = vmatpush.msra.mxu0 0.0
      %1238 = vmatpush.msra.mxu0 0.0
      %1239 = vmatpush.msra.mxu0 0.0
      %1240 = vmatpush.msra.mxu0 0.0
      %1241 = vmatpush.msra.mxu0 0.0
      %1242 = vmatpush.msra.mxu0 0.0
      %v1243 = vand.u32 %v1234, 4294901760
      %1244 = vmatpush.msra.mxu0 %v1243
      %v1245 = vand.u32 %v1231, 4294901760
      %1246 = vmatpush.msra.mxu0 %v1245
      %v1247 = vand.u32 %v1228, 4294901760
      %1248 = vmatpush.msra.mxu0 %v1247
      %v1249 = vand.u32 %v1225, 4294901760
      %1250 = vmatpush.msra.mxu0 %v1249
      %v1251 = vand.u32 %v1222, 4294901760
      %1252 = vmatpush.msra.mxu0 %v1251
      %v1253 = vand.u32 %v1219, 4294901760
      %1254 = vmatpush.msra.mxu0 %v1253
      %v1255 = vand.u32 %v1216, 4294901760
      %1256 = vmatpush.msra.mxu0 %v1255
      %v1257 = vand.u32 %v1213, 4294901760
      %1258 = vmatpush.msra.mxu0 %v1257
      %v1259 = vand.u32 %v367, 4294901760
      %v1260 = vsub.f32 %v367, %v1259
      %v1261 = vand.u32 %v1260, 4294901760
      %v1262 = vsub.f32 %v1260, %v1261
      %v1263 = vand.u32 %v1262, 4294901760
      %1264 = vmatmul.f32.gmra.mxu0 %v1263
      %v1265 = vpop.f32.mrf.mxu0
      %v1266 = vadd.f32 0.0, %v1265
      %v1267 = vand.u32 %v370, 4294901760
      %v1268 = vsub.f32 %v370, %v1267
      %v1269 = vand.u32 %v1268, 4294901760
      %v1270 = vsub.f32 %v1268, %v1269
      %v1271 = vand.u32 %v1270, 4294901760
      %1272 = vmatmul.f32.gmra.mxu0 %v1271
      %v1273 = vpop.f32.mrf.mxu0
      %v1274 = vadd.f32 0.0, %v1273
      %v1275 = vand.u32 %v373, 4294901760
      %v1276 = vsub.f32 %v373, %v1275
      %v1277 = vand.u32 %v1276, 4294901760
      %v1278 = vsub.f32 %v1276, %v1277
      %v1279 = vand.u32 %v1278, 4294901760
      %1280 = vmatmul.f32.gmra.mxu0 %v1279
      %v1281 = vpop.f32.mrf.mxu0
      %v1282 = vadd.f32 0.0, %v1281
      %v1283 = vand.u32 %v376, 4294901760
      %v1284 = vsub.f32 %v376, %v1283
      %v1285 = vand.u32 %v1284, 4294901760
      %v1286 = vsub.f32 %v1284, %v1285
      %v1287 = vand.u32 %v1286, 4294901760
      %1288 = vmatmul.f32.gmra.mxu0 %v1287
      %v1289 = vpop.f32.mrf.mxu0
      %v1290 = vadd.f32 0.0, %v1289
      %1291 = vdwg.mxu0
      %1292 = vmatpush.msra.mxu0 0.0
      %1293 = vmatpush.msra.mxu0 0.0
      %1294 = vmatpush.msra.mxu0 0.0
      %1295 = vmatpush.msra.mxu0 0.0
      %1296 = vmatpush.msra.mxu0 0.0
      %1297 = vmatpush.msra.mxu0 0.0
      %1298 = vmatpush.msra.mxu0 0.0
      %1299 = vmatpush.msra.mxu0 0.0
      %v1300 = vand.u32 %v1234, 4294901760
      %v1301 = vsub.f32 %v1234, %v1300
      %v1302 = vand.u32 %v1301, 4294901760
      %v1303 = vsub.f32 %v1301, %v1302
      %v1304 = vand.u32 %v1303, 4294901760
      %1305 = vmatpush.msra.mxu0 %v1304
      %v1306 = vand.u32 %v1231, 4294901760
      %v1307 = vsub.f32 %v1231, %v1306
      %v1308 = vand.u32 %v1307, 4294901760
      %v1309 = vsub.f32 %v1307, %v1308
      %v1310 = vand.u32 %v1309, 4294901760
      %1311 = vmatpush.msra.mxu0 %v1310
      %v1312 = vand.u32 %v1228, 4294901760
      %v1313 = vsub.f32 %v1228, %v1312
      %v1314 = vand.u32 %v1313, 4294901760
      %v1315 = vsub.f32 %v1313, %v1314
      %v1316 = vand.u32 %v1315, 4294901760
      %1317 = vmatpush.msra.mxu0 %v1316
      %v1318 = vand.u32 %v1225, 4294901760
      %v1319 = vsub.f32 %v1225, %v1318
      %v1320 = vand.u32 %v1319, 4294901760
      %v1321 = vsub.f32 %v1319, %v1320
      %v1322 = vand.u32 %v1321, 4294901760
      %1323 = vmatpush.msra.mxu0 %v1322
      %v1324 = vand.u32 %v1222, 4294901760
      %v1325 = vsub.f32 %v1222, %v1324
      %v1326 = vand.u32 %v1325, 4294901760
      %v1327 = vsub.f32 %v1325, %v1326
      %v1328 = vand.u32 %v1327, 4294901760
      %1329 = vmatpush.msra.mxu0 %v1328
      %v1330 = vand.u32 %v1219, 4294901760
      %v1331 = vsub.f32 %v1219, %v1330
      %v1332 = vand.u32 %v1331, 4294901760
      %v1333 = vsub.f32 %v1331, %v1332
      %v1334 = vand.u32 %v1333, 4294901760
      %1335 = vmatpush.msra.mxu0 %v1334
      %v1336 = vand.u32 %v1216, 4294901760
      %v1337 = vsub.f32 %v1216, %v1336
      %v1338 = vand.u32 %v1337, 4294901760
      %v1339 = vsub.f32 %v1337, %v1338
      %v1340 = vand.u32 %v1339, 4294901760
      %1341 = vmatpush.msra.mxu0 %v1340
      %v1342 = vand.u32 %v1213, 4294901760
      %v1343 = vsub.f32 %v1213, %v1342
      %v1344 = vand.u32 %v1343, 4294901760
      %v1345 = vsub.f32 %v1343, %v1344
      %v1346 = vand.u32 %v1345, 4294901760
      %1347 = vmatpush.msra.mxu0 %v1346
      %v1348 = vand.u32 %v367, 4294901760
      %1349 = vmatmul.f32.gmra.mxu0 %v1348
      %v1350 = vpop.f32.mrf.mxu0
      %v1351 = vadd.f32 %v1266, %v1350
      %v1352 = vand.u32 %v370, 4294901760
      %1353 = vmatmul.f32.gmra.mxu0 %v1352
      %v1354 = vpop.f32.mrf.mxu0
      %v1355 = vadd.f32 %v1274, %v1354
      %v1356 = vand.u32 %v373, 4294901760
      %1357 = vmatmul.f32.gmra.mxu0 %v1356
      %v1358 = vpop.f32.mrf.mxu0
      %v1359 = vadd.f32 %v1282, %v1358
      %v1360 = vand.u32 %v376, 4294901760
      %1361 = vmatmul.f32.gmra.mxu0 %v1360
      %v1362 = vpop.f32.mrf.mxu0
      %v1363 = vadd.f32 %v1290, %v1362
      %1364 = vdwg.mxu0
      %1365 = vmatpush.msra.mxu0 0.0
      %1366 = vmatpush.msra.mxu0 0.0
      %1367 = vmatpush.msra.mxu0 0.0
      %1368 = vmatpush.msra.mxu0 0.0
      %1369 = vmatpush.msra.mxu0 0.0
      %1370 = vmatpush.msra.mxu0 0.0
      %1371 = vmatpush.msra.mxu0 0.0
      %1372 = vmatpush.msra.mxu0 0.0
      %v1373 = vand.u32 %v1234, 4294901760
      %v1374 = vsub.f32 %v1234, %v1373
      %1375 = vmatpush.msra.mxu0 %v1374
      %v1376 = vand.u32 %v1231, 4294901760
      %v1377 = vsub.f32 %v1231, %v1376
      %1378 = vmatpush.msra.mxu0 %v1377
      %v1379 = vand.u32 %v1228, 4294901760
      %v1380 = vsub.f32 %v1228, %v1379
      %1381 = vmatpush.msra.mxu0 %v1380
      %v1382 = vand.u32 %v1225, 4294901760
      %v1383 = vsub.f32 %v1225, %v1382
      %1384 = vmatpush.msra.mxu0 %v1383
      %v1385 = vand.u32 %v1222, 4294901760
      %v1386 = vsub.f32 %v1222, %v1385
      %1387 = vmatpush.msra.mxu0 %v1386
      %v1388 = vand.u32 %v1219, 4294901760
      %v1389 = vsub.f32 %v1219, %v1388
      %1390 = vmatpush.msra.mxu0 %v1389
      %v1391 = vand.u32 %v1216, 4294901760
      %v1392 = vsub.f32 %v1216, %v1391
      %1393 = vmatpush.msra.mxu0 %v1392
      %v1394 = vand.u32 %v1213, 4294901760
      %v1395 = vsub.f32 %v1213, %v1394
      %1396 = vmatpush.msra.mxu0 %v1395
      %v1397 = vand.u32 %v367, 4294901760
      %v1398 = vsub.f32 %v367, %v1397
      %1399 = vmatmul.f32.gmra.mxu0 %v1398
      %v1400 = vpop.f32.mrf.mxu0
      %v1401 = vadd.f32 %v1351, %v1400
      %v1402 = vand.u32 %v370, 4294901760
      %v1403 = vsub.f32 %v370, %v1402
      %1404 = vmatmul.f32.gmra.mxu0 %v1403
      %v1405 = vpop.f32.mrf.mxu0
      %v1406 = vadd.f32 %v1355, %v1405
      %v1407 = vand.u32 %v373, 4294901760
      %v1408 = vsub.f32 %v373, %v1407
      %1409 = vmatmul.f32.gmra.mxu0 %v1408
      %v1410 = vpop.f32.mrf.mxu0
      %v1411 = vadd.f32 %v1359, %v1410
      %v1412 = vand.u32 %v376, 4294901760
      %v1413 = vsub.f32 %v376, %v1412
      %1414 = vmatmul.f32.gmra.mxu0 %v1413
      %v1415 = vpop.f32.mrf.mxu0
      %v1416 = vadd.f32 %v1363, %v1415
      %1417 = vdwg.mxu0
      %1418 = vmatpush.msra.mxu0 0.0
      %1419 = vmatpush.msra.mxu0 0.0
      %1420 = vmatpush.msra.mxu0 0.0
      %1421 = vmatpush.msra.mxu0 0.0
      %1422 = vmatpush.msra.mxu0 0.0
      %1423 = vmatpush.msra.mxu0 0.0
      %1424 = vmatpush.msra.mxu0 0.0
      %1425 = vmatpush.msra.mxu0 0.0
      %v1426 = vand.u32 %v1234, 4294901760
      %1427 = vmatpush.msra.mxu0 %v1426
      %v1428 = vand.u32 %v1231, 4294901760
      %1429 = vmatpush.msra.mxu0 %v1428
      %v1430 = vand.u32 %v1228, 4294901760
      %1431 = vmatpush.msra.mxu0 %v1430
      %v1432 = vand.u32 %v1225, 4294901760
      %1433 = vmatpush.msra.mxu0 %v1432
      %v1434 = vand.u32 %v1222, 4294901760
      %1435 = vmatpush.msra.mxu0 %v1434
      %v1436 = vand.u32 %v1219, 4294901760
      %1437 = vmatpush.msra.mxu0 %v1436
      %v1438 = vand.u32 %v1216, 4294901760
      %1439 = vmatpush.msra.mxu0 %v1438
      %v1440 = vand.u32 %v1213, 4294901760
      %1441 = vmatpush.msra.mxu0 %v1440
      %v1442 = vand.u32 %v367, 4294901760
      %v1443 = vsub.f32 %v367, %v1442
      %v1444 = vand.u32 %v1443, 4294901760
      %1445 = vmatmul.f32.gmra.mxu0 %v1444
      %v1446 = vpop.f32.mrf.mxu0
      %v1447 = vadd.f32 %v1401, %v1446
      %v1448 = vand.u32 %v370, 4294901760
      %v1449 = vsub.f32 %v370, %v1448
      %v1450 = vand.u32 %v1449, 4294901760
      %1451 = vmatmul.f32.gmra.mxu0 %v1450
      %v1452 = vpop.f32.mrf.mxu0
      %v1453 = vadd.f32 %v1406, %v1452
      %v1454 = vand.u32 %v373, 4294901760
      %v1455 = vsub.f32 %v373, %v1454
      %v1456 = vand.u32 %v1455, 4294901760
      %1457 = vmatmul.f32.gmra.mxu0 %v1456
      %v1458 = vpop.f32.mrf.mxu0
      %v1459 = vadd.f32 %v1411, %v1458
      %v1460 = vand.u32 %v376, 4294901760
      %v1461 = vsub.f32 %v376, %v1460
      %v1462 = vand.u32 %v1461, 4294901760
      %1463 = vmatmul.f32.gmra.mxu0 %v1462
      %v1464 = vpop.f32.mrf.mxu0
      %v1465 = vadd.f32 %v1416, %v1464
      %1466 = vdwg.mxu0
      %1467 = vmatpush.msra.mxu0 0.0
      %1468 = vmatpush.msra.mxu0 0.0
      %1469 = vmatpush.msra.mxu0 0.0
      %1470 = vmatpush.msra.mxu0 0.0
      %1471 = vmatpush.msra.mxu0 0.0
      %1472 = vmatpush.msra.mxu0 0.0
      %1473 = vmatpush.msra.mxu0 0.0
      %1474 = vmatpush.msra.mxu0 0.0
      %v1475 = vand.u32 %v1234, 4294901760
      %v1476 = vsub.f32 %v1234, %v1475
      %v1477 = vand.u32 %v1476, 4294901760
      %1478 = vmatpush.msra.mxu0 %v1477
      %v1479 = vand.u32 %v1231, 4294901760
      %v1480 = vsub.f32 %v1231, %v1479
      %v1481 = vand.u32 %v1480, 4294901760
      %1482 = vmatpush.msra.mxu0 %v1481
      %v1483 = vand.u32 %v1228, 4294901760
      %v1484 = vsub.f32 %v1228, %v1483
      %v1485 = vand.u32 %v1484, 4294901760
      %1486 = vmatpush.msra.mxu0 %v1485
      %v1487 = vand.u32 %v1225, 4294901760
      %v1488 = vsub.f32 %v1225, %v1487
      %v1489 = vand.u32 %v1488, 4294901760
      %1490 = vmatpush.msra.mxu0 %v1489
      %v1491 = vand.u32 %v1222, 4294901760
      %v1492 = vsub.f32 %v1222, %v1491
      %v1493 = vand.u32 %v1492, 4294901760
      %1494 = vmatpush.msra.mxu0 %v1493
      %v1495 = vand.u32 %v1219, 4294901760
      %v1496 = vsub.f32 %v1219, %v1495
      %v1497 = vand.u32 %v1496, 4294901760
      %1498 = vmatpush.msra.mxu0 %v1497
      %v1499 = vand.u32 %v1216, 4294901760
      %v1500 = vsub.f32 %v1216, %v1499
      %v1501 = vand.u32 %v1500, 4294901760
      %1502 = vmatpush.msra.mxu0 %v1501
      %v1503 = vand.u32 %v1213, 4294901760
      %v1504 = vsub.f32 %v1213, %v1503
      %v1505 = vand.u32 %v1504, 4294901760
      %1506 = vmatpush.msra.mxu0 %v1505
      %v1507 = vand.u32 %v367, 4294901760
      %1508 = vmatmul.f32.gmra.mxu0 %v1507
      %v1509 = vpop.f32.mrf.mxu0
      %v1510 = vadd.f32 %v1447, %v1509
      %v1511 = vand.u32 %v370, 4294901760
      %1512 = vmatmul.f32.gmra.mxu0 %v1511
      %v1513 = vpop.f32.mrf.mxu0
      %v1514 = vadd.f32 %v1453, %v1513
      %v1515 = vand.u32 %v373, 4294901760
      %1516 = vmatmul.f32.gmra.mxu0 %v1515
      %v1517 = vpop.f32.mrf.mxu0
      %v1518 = vadd.f32 %v1459, %v1517
      %v1519 = vand.u32 %v376, 4294901760
      %1520 = vmatmul.f32.gmra.mxu0 %v1519
      %v1521 = vpop.f32.mrf.mxu0
      %v1522 = vadd.f32 %v1465, %v1521
      %1523 = vdwg.mxu0
      %1524 = vmatpush.msra.mxu0 0.0
      %1525 = vmatpush.msra.mxu0 0.0
      %1526 = vmatpush.msra.mxu0 0.0
      %1527 = vmatpush.msra.mxu0 0.0
      %1528 = vmatpush.msra.mxu0 0.0
      %1529 = vmatpush.msra.mxu0 0.0
      %1530 = vmatpush.msra.mxu0 0.0
      %1531 = vmatpush.msra.mxu0 0.0
      %v1532 = vand.u32 %v1234, 4294901760
      %1533 = vmatpush.msra.mxu0 %v1532
      %v1534 = vand.u32 %v1231, 4294901760
      %1535 = vmatpush.msra.mxu0 %v1534
      %v1536 = vand.u32 %v1228, 4294901760
      %1537 = vmatpush.msra.mxu0 %v1536
      %v1538 = vand.u32 %v1225, 4294901760
      %1539 = vmatpush.msra.mxu0 %v1538
      %v1540 = vand.u32 %v1222, 4294901760
      %1541 = vmatpush.msra.mxu0 %v1540
      %v1542 = vand.u32 %v1219, 4294901760
      %1543 = vmatpush.msra.mxu0 %v1542
      %v1544 = vand.u32 %v1216, 4294901760
      %1545 = vmatpush.msra.mxu0 %v1544
      %v1546 = vand.u32 %v1213, 4294901760
      %1547 = vmatpush.msra.mxu0 %v1546
      %v1548 = vand.u32 %v367, 4294901760
      %1549 = vmatmul.f32.gmra.mxu0 %v1548
      %v1550 = vpop.f32.mrf.mxu0
      %v1551 = vadd.f32 %v1510, %v1550
      %v1552 = vand.u32 %v370, 4294901760
      %1553 = vmatmul.f32.gmra.mxu0 %v1552
      %v1554 = vpop.f32.mrf.mxu0
      %v1555 = vadd.f32 %v1514, %v1554
      %v1556 = vand.u32 %v373, 4294901760
      %1557 = vmatmul.f32.gmra.mxu0 %v1556
      %v1558 = vpop.f32.mrf.mxu0
      %v1559 = vadd.f32 %v1518, %v1558
      %v1560 = vand.u32 %v376, 4294901760
      %1561 = vmatmul.f32.gmra.mxu0 %v1560
      %v1562 = vpop.f32.mrf.mxu0
      %v1563 = vadd.f32 %v1522, %v1562
      %1564 = vdwg.mxu0
      %v1565 = vmul.f32 %v1551, 0.001953125
      %v1566 = vmul.f32 %v1555, 0.001953125
      %v1567 = vmul.f32 %v1559, 0.001953125
      %v1568 = vmul.f32 %v1563, 0.001953125
      %v1569 = vadd.f32 %v1565, 1e-06
      %v1570 = vadd.f32 %v1566, 1e-06
      %v1571 = vadd.f32 %v1567, 1e-06
      %v1572 = vadd.f32 %v1568, 1e-06
      %v1573 = vrsqrt.pop %v1569
      %v1574 = vmul.f32 %v1573, %v1569
      %v1575 = vmul.f32 %v1574, %v1573
      %v1576 = vmul.f32 0.5, %v1575
      %v1577 = vsub.f32 1.5, %v1576
      %v1578 = vmul.f32 %v1573, %v1577
      %vm1579 = vweird.f32 %v1569
      %vm1580 = vweird.f32 %v1573
      %vm1581 = vmor %vm1579, %vm1580
      %v1582 = vsel %vm1581, %v1573, %v1578
      %v1583 = vrsqrt.pop %v1570
      %v1584 = vmul.f32 %v1583, %v1570
      %v1585 = vmul.f32 %v1584, %v1583
      %v1586 = vmul.f32 0.5, %v1585
      %v1587 = vsub.f32 1.5, %v1586
      %v1588 = vmul.f32 %v1583, %v1587
      %vm1589 = vweird.f32 %v1570
      %vm1590 = vweird.f32 %v1583
      %vm1591 = vmor %vm1589, %vm1590
      %v1592 = vsel %vm1591, %v1583, %v1588
      %v1593 = vrsqrt.pop %v1571
      %v1594 = vmul.f32 %v1593, %v1571
      %v1595 = vmul.f32 %v1594, %v1593
      %v1596 = vmul.f32 0.5, %v1595
      %v1597 = vsub.f32 1.5, %v1596
      %v1598 = vmul.f32 %v1593, %v1597
      %vm1599 = vweird.f32 %v1571
      %vm1600 = vweird.f32 %v1593
      %vm1601 = vmor %vm1599, %vm1600
      %v1602 = vsel %vm1601, %v1593, %v1598
      %v1603 = vrsqrt.pop %v1572
      %v1604 = vmul.f32 %v1603, %v1572
      %v1605 = vmul.f32 %v1604, %v1603
      %v1606 = vmul.f32 0.5, %v1605
      %v1607 = vsub.f32 1.5, %v1606
      %v1608 = vmul.f32 %v1603, %v1607
      %vm1609 = vweird.f32 %v1572
      %vm1610 = vweird.f32 %v1603
      %vm1611 = vmor %vm1609, %vm1610
      %v1612 = vsel %vm1611, %v1603, %v1608
      %1613 = vmatpush.msra.mxu0 0.0
      %1614 = vmatpush.msra.mxu0 0.0
      %1615 = vmatpush.msra.mxu0 0.0
      %1616 = vmatpush.msra.mxu0 0.0
      %1617 = vmatpush.msra.mxu0 0.0
      %1618 = vmatpush.msra.mxu0 0.0
      %1619 = vmatpush.msra.mxu0 0.0
      %1620 = vmatpush.msra.mxu0 0.0
      %1621 = vmatpush.msra.mxu0 0.0
      %1622 = vmatpush.msra.mxu0 0.0
      %1623 = vmatpush.msra.mxu0 0.0
      %1624 = vmatpush.msra.mxu0 0.0
      %v1625 = vand.u32 %v1612, 4294901760
      %1626 = vmatpush.msra.mxu0 %v1625
      %v1627 = vand.u32 %v1602, 4294901760
      %1628 = vmatpush.msra.mxu0 %v1627
      %v1629 = vand.u32 %v1592, 4294901760
      %1630 = vmatpush.msra.mxu0 %v1629
      %v1631 = vand.u32 %v1582, 4294901760
      %1632 = vmatpush.msra.mxu0 %v1631
      %v1633 = vand.u32 %v714, 4294901760
      %v1634 = vsub.f32 %v714, %v1633
      %v1635 = vand.u32 %v1634, 4294901760
      %v1636 = vsub.f32 %v1634, %v1635
      %v1637 = vand.u32 %v1636, 4294901760
      %1638 = vmatmul.f32.gmra.mxu0 %v1637
      %v1639 = vpop.f32.mrf.mxu0
      %v1640 = vadd.f32 0.0, %v1639
      %v1641 = vand.u32 %v717, 4294901760
      %v1642 = vsub.f32 %v717, %v1641
      %v1643 = vand.u32 %v1642, 4294901760
      %v1644 = vsub.f32 %v1642, %v1643
      %v1645 = vand.u32 %v1644, 4294901760
      %1646 = vmatmul.f32.gmra.mxu0 %v1645
      %v1647 = vpop.f32.mrf.mxu0
      %v1648 = vadd.f32 0.0, %v1647
      %v1649 = vand.u32 %v720, 4294901760
      %v1650 = vsub.f32 %v720, %v1649
      %v1651 = vand.u32 %v1650, 4294901760
      %v1652 = vsub.f32 %v1650, %v1651
      %v1653 = vand.u32 %v1652, 4294901760
      %1654 = vmatmul.f32.gmra.mxu0 %v1653
      %v1655 = vpop.f32.mrf.mxu0
      %v1656 = vadd.f32 0.0, %v1655
      %v1657 = vand.u32 %v723, 4294901760
      %v1658 = vsub.f32 %v723, %v1657
      %v1659 = vand.u32 %v1658, 4294901760
      %v1660 = vsub.f32 %v1658, %v1659
      %v1661 = vand.u32 %v1660, 4294901760
      %1662 = vmatmul.f32.gmra.mxu0 %v1661
      %v1663 = vpop.f32.mrf.mxu0
      %v1664 = vadd.f32 0.0, %v1663
      %v1665 = vand.u32 %v726, 4294901760
      %v1666 = vsub.f32 %v726, %v1665
      %v1667 = vand.u32 %v1666, 4294901760
      %v1668 = vsub.f32 %v1666, %v1667
      %v1669 = vand.u32 %v1668, 4294901760
      %1670 = vmatmul.f32.gmra.mxu0 %v1669
      %v1671 = vpop.f32.mrf.mxu0
      %v1672 = vadd.f32 0.0, %v1671
      %v1673 = vand.u32 %v729, 4294901760
      %v1674 = vsub.f32 %v729, %v1673
      %v1675 = vand.u32 %v1674, 4294901760
      %v1676 = vsub.f32 %v1674, %v1675
      %v1677 = vand.u32 %v1676, 4294901760
      %1678 = vmatmul.f32.gmra.mxu0 %v1677
      %v1679 = vpop.f32.mrf.mxu0
      %v1680 = vadd.f32 0.0, %v1679
      %v1681 = vand.u32 %v732, 4294901760
      %v1682 = vsub.f32 %v732, %v1681
      %v1683 = vand.u32 %v1682, 4294901760
      %v1684 = vsub.f32 %v1682, %v1683
      %v1685 = vand.u32 %v1684, 4294901760
      %1686 = vmatmul.f32.gmra.mxu0 %v1685
      %v1687 = vpop.f32.mrf.mxu0
      %v1688 = vadd.f32 0.0, %v1687
      %v1689 = vand.u32 %v735, 4294901760
      %v1690 = vsub.f32 %v735, %v1689
      %v1691 = vand.u32 %v1690, 4294901760
      %v1692 = vsub.f32 %v1690, %v1691
      %v1693 = vand.u32 %v1692, 4294901760
      %1694 = vmatmul.f32.gmra.mxu0 %v1693
      %v1695 = vpop.f32.mrf.mxu0
      %v1696 = vadd.f32 0.0, %v1695
      %1697 = vdwg.mxu0
      %1698 = vmatpush.msra.mxu0 0.0
      %1699 = vmatpush.msra.mxu0 0.0
      %1700 = vmatpush.msra.mxu0 0.0
      %1701 = vmatpush.msra.mxu0 0.0
      %1702 = vmatpush.msra.mxu0 0.0
      %1703 = vmatpush.msra.mxu0 0.0
      %1704 = vmatpush.msra.mxu0 0.0
      %1705 = vmatpush.msra.mxu0 0.0
      %1706 = vmatpush.msra.mxu0 0.0
      %1707 = vmatpush.msra.mxu0 0.0
      %1708 = vmatpush.msra.mxu0 0.0
      %1709 = vmatpush.msra.mxu0 0.0
      %v1710 = vand.u32 %v1612, 4294901760
      %v1711 = vsub.f32 %v1612, %v1710
      %v1712 = vand.u32 %v1711, 4294901760
      %v1713 = vsub.f32 %v1711, %v1712
      %v1714 = vand.u32 %v1713, 4294901760
      %1715 = vmatpush.msra.mxu0 %v1714
      %v1716 = vand.u32 %v1602, 4294901760
      %v1717 = vsub.f32 %v1602, %v1716
      %v1718 = vand.u32 %v1717, 4294901760
      %v1719 = vsub.f32 %v1717, %v1718
      %v1720 = vand.u32 %v1719, 4294901760
      %1721 = vmatpush.msra.mxu0 %v1720
      %v1722 = vand.u32 %v1592, 4294901760
      %v1723 = vsub.f32 %v1592, %v1722
      %v1724 = vand.u32 %v1723, 4294901760
      %v1725 = vsub.f32 %v1723, %v1724
      %v1726 = vand.u32 %v1725, 4294901760
      %1727 = vmatpush.msra.mxu0 %v1726
      %v1728 = vand.u32 %v1582, 4294901760
      %v1729 = vsub.f32 %v1582, %v1728
      %v1730 = vand.u32 %v1729, 4294901760
      %v1731 = vsub.f32 %v1729, %v1730
      %v1732 = vand.u32 %v1731, 4294901760
      %1733 = vmatpush.msra.mxu0 %v1732
      %v1734 = vand.u32 %v714, 4294901760
      %1735 = vmatmul.f32.gmra.mxu0 %v1734
      %v1736 = vpop.f32.mrf.mxu0
      %v1737 = vadd.f32 %v1640, %v1736
      %v1738 = vand.u32 %v717, 4294901760
      %1739 = vmatmul.f32.gmra.mxu0 %v1738
      %v1740 = vpop.f32.mrf.mxu0
      %v1741 = vadd.f32 %v1648, %v1740
      %v1742 = vand.u32 %v720, 4294901760
      %1743 = vmatmul.f32.gmra.mxu0 %v1742
      %v1744 = vpop.f32.mrf.mxu0
      %v1745 = vadd.f32 %v1656, %v1744
      %v1746 = vand.u32 %v723, 4294901760
      %1747 = vmatmul.f32.gmra.mxu0 %v1746
      %v1748 = vpop.f32.mrf.mxu0
      %v1749 = vadd.f32 %v1664, %v1748
      %v1750 = vand.u32 %v726, 4294901760
      %1751 = vmatmul.f32.gmra.mxu0 %v1750
      %v1752 = vpop.f32.mrf.mxu0
      %v1753 = vadd.f32 %v1672, %v1752
      %v1754 = vand.u32 %v729, 4294901760
      %1755 = vmatmul.f32.gmra.mxu0 %v1754
      %v1756 = vpop.f32.mrf.mxu0
      %v1757 = vadd.f32 %v1680, %v1756
      %v1758 = vand.u32 %v732, 4294901760
      %1759 = vmatmul.f32.gmra.mxu0 %v1758
      %v1760 = vpop.f32.mrf.mxu0
      %v1761 = vadd.f32 %v1688, %v1760
      %v1762 = vand.u32 %v735, 4294901760
      %1763 = vmatmul.f32.gmra.mxu0 %v1762
      %v1764 = vpop.f32.mrf.mxu0
      %v1765 = vadd.f32 %v1696, %v1764
      %1766 = vdwg.mxu0
      %1767 = vmatpush.msra.mxu0 0.0
      %1768 = vmatpush.msra.mxu0 0.0
      %1769 = vmatpush.msra.mxu0 0.0
      %1770 = vmatpush.msra.mxu0 0.0
      %1771 = vmatpush.msra.mxu0 0.0
      %1772 = vmatpush.msra.mxu0 0.0
      %1773 = vmatpush.msra.mxu0 0.0
      %1774 = vmatpush.msra.mxu0 0.0
      %1775 = vmatpush.msra.mxu0 0.0
      %1776 = vmatpush.msra.mxu0 0.0
      %1777 = vmatpush.msra.mxu0 0.0
      %1778 = vmatpush.msra.mxu0 0.0
      %v1779 = vand.u32 %v1612, 4294901760
      %v1780 = vsub.f32 %v1612, %v1779
      %1781 = vmatpush.msra.mxu0 %v1780
      %v1782 = vand.u32 %v1602, 4294901760
      %v1783 = vsub.f32 %v1602, %v1782
      %1784 = vmatpush.msra.mxu0 %v1783
      %v1785 = vand.u32 %v1592, 4294901760
      %v1786 = vsub.f32 %v1592, %v1785
      %1787 = vmatpush.msra.mxu0 %v1786
      %v1788 = vand.u32 %v1582, 4294901760
      %v1789 = vsub.f32 %v1582, %v1788
      %1790 = vmatpush.msra.mxu0 %v1789
      %v1791 = vand.u32 %v714, 4294901760
      %v1792 = vsub.f32 %v714, %v1791
      %1793 = vmatmul.f32.gmra.mxu0 %v1792
      %v1794 = vpop.f32.mrf.mxu0
      %v1795 = vadd.f32 %v1737, %v1794
      %v1796 = vand.u32 %v717, 4294901760
      %v1797 = vsub.f32 %v717, %v1796
      %1798 = vmatmul.f32.gmra.mxu0 %v1797
      %v1799 = vpop.f32.mrf.mxu0
      %v1800 = vadd.f32 %v1741, %v1799
      %v1801 = vand.u32 %v720, 4294901760
      %v1802 = vsub.f32 %v720, %v1801
      %1803 = vmatmul.f32.gmra.mxu0 %v1802
      %v1804 = vpop.f32.mrf.mxu0
      %v1805 = vadd.f32 %v1745, %v1804
      %v1806 = vand.u32 %v723, 4294901760
      %v1807 = vsub.f32 %v723, %v1806
      %1808 = vmatmul.f32.gmra.mxu0 %v1807
      %v1809 = vpop.f32.mrf.mxu0
      %v1810 = vadd.f32 %v1749, %v1809
      %v1811 = vand.u32 %v726, 4294901760
      %v1812 = vsub.f32 %v726, %v1811
      %1813 = vmatmul.f32.gmra.mxu0 %v1812
      %v1814 = vpop.f32.mrf.mxu0
      %v1815 = vadd.f32 %v1753, %v1814
      %v1816 = vand.u32 %v729, 4294901760
      %v1817 = vsub.f32 %v729, %v1816
      %1818 = vmatmul.f32.gmra.mxu0 %v1817
      %v1819 = vpop.f32.mrf.mxu0
      %v1820 = vadd.f32 %v1757, %v1819
      %v1821 = vand.u32 %v732, 4294901760
      %v1822 = vsub.f32 %v732, %v1821
      %1823 = vmatmul.f32.gmra.mxu0 %v1822
      %v1824 = vpop.f32.mrf.mxu0
      %v1825 = vadd.f32 %v1761, %v1824
      %v1826 = vand.u32 %v735, 4294901760
      %v1827 = vsub.f32 %v735, %v1826
      %1828 = vmatmul.f32.gmra.mxu0 %v1827
      %v1829 = vpop.f32.mrf.mxu0
      %v1830 = vadd.f32 %v1765, %v1829
      %1831 = vdwg.mxu0
      %1832 = vmatpush.msra.mxu0 0.0
      %1833 = vmatpush.msra.mxu0 0.0
      %1834 = vmatpush.msra.mxu0 0.0
      %1835 = vmatpush.msra.mxu0 0.0
      %1836 = vmatpush.msra.mxu0 0.0
      %1837 = vmatpush.msra.mxu0 0.0
      %1838 = vmatpush.msra.mxu0 0.0
      %1839 = vmatpush.msra.mxu0 0.0
      %1840 = vmatpush.msra.mxu0 0.0
      %1841 = vmatpush.msra.mxu0 0.0
      %1842 = vmatpush.msra.mxu0 0.0
      %1843 = vmatpush.msra.mxu0 0.0
      %v1844 = vand.u32 %v1612, 4294901760
      %1845 = vmatpush.msra.mxu0 %v1844
      %v1846 = vand.u32 %v1602, 4294901760
      %1847 = vmatpush.msra.mxu0 %v1846
      %v1848 = vand.u32 %v1592, 4294901760
      %1849 = vmatpush.msra.mxu0 %v1848
      %v1850 = vand.u32 %v1582, 4294901760
      %1851 = vmatpush.msra.mxu0 %v1850
      %v1852 = vand.u32 %v714, 4294901760
      %v1853 = vsub.f32 %v714, %v1852
      %v1854 = vand.u32 %v1853, 4294901760
      %1855 = vmatmul.f32.gmra.mxu0 %v1854
      %v1856 = vpop.f32.mrf.mxu0
      %v1857 = vadd.f32 %v1795, %v1856
      %v1858 = vand.u32 %v717, 4294901760
      %v1859 = vsub.f32 %v717, %v1858
      %v1860 = vand.u32 %v1859, 4294901760
      %1861 = vmatmul.f32.gmra.mxu0 %v1860
      %v1862 = vpop.f32.mrf.mxu0
      %v1863 = vadd.f32 %v1800, %v1862
      %v1864 = vand.u32 %v720, 4294901760
      %v1865 = vsub.f32 %v720, %v1864
      %v1866 = vand.u32 %v1865, 4294901760
      %1867 = vmatmul.f32.gmra.mxu0 %v1866
      %v1868 = vpop.f32.mrf.mxu0
      %v1869 = vadd.f32 %v1805, %v1868
      %v1870 = vand.u32 %v723, 4294901760
      %v1871 = vsub.f32 %v723, %v1870
      %v1872 = vand.u32 %v1871, 4294901760
      %1873 = vmatmul.f32.gmra.mxu0 %v1872
      %v1874 = vpop.f32.mrf.mxu0
      %v1875 = vadd.f32 %v1810, %v1874
      %v1876 = vand.u32 %v726, 4294901760
      %v1877 = vsub.f32 %v726, %v1876
      %v1878 = vand.u32 %v1877, 4294901760
      %1879 = vmatmul.f32.gmra.mxu0 %v1878
      %v1880 = vpop.f32.mrf.mxu0
      %v1881 = vadd.f32 %v1815, %v1880
      %v1882 = vand.u32 %v729, 4294901760
      %v1883 = vsub.f32 %v729, %v1882
      %v1884 = vand.u32 %v1883, 4294901760
      %1885 = vmatmul.f32.gmra.mxu0 %v1884
      %v1886 = vpop.f32.mrf.mxu0
      %v1887 = vadd.f32 %v1820, %v1886
      %v1888 = vand.u32 %v732, 4294901760
      %v1889 = vsub.f32 %v732, %v1888
      %v1890 = vand.u32 %v1889, 4294901760
      %1891 = vmatmul.f32.gmra.mxu0 %v1890
      %v1892 = vpop.f32.mrf.mxu0
      %v1893 = vadd.f32 %v1825, %v1892
      %v1894 = vand.u32 %v735, 4294901760
      %v1895 = vsub.f32 %v735, %v1894
      %v1896 = vand.u32 %v1895, 4294901760
      %1897 = vmatmul.f32.gmra.mxu0 %v1896
      %v1898 = vpop.f32.mrf.mxu0
      %v1899 = vadd.f32 %v1830, %v1898
      %1900 = vdwg.mxu0
      %1901 = vmatpush.msra.mxu0 0.0
      %1902 = vmatpush.msra.mxu0 0.0
      %1903 = vmatpush.msra.mxu0 0.0
      %1904 = vmatpush.msra.mxu0 0.0
      %1905 = vmatpush.msra.mxu0 0.0
      %1906 = vmatpush.msra.mxu0 0.0
      %1907 = vmatpush.msra.mxu0 0.0
      %1908 = vmatpush.msra.mxu0 0.0
      %1909 = vmatpush.msra.mxu0 0.0
      %1910 = vmatpush.msra.mxu0 0.0
      %1911 = vmatpush.msra.mxu0 0.0
      %1912 = vmatpush.msra.mxu0 0.0
      %v1913 = vand.u32 %v1612, 4294901760
      %v1914 = vsub.f32 %v1612, %v1913
      %v1915 = vand.u32 %v1914, 4294901760
      %1916 = vmatpush.msra.mxu0 %v1915
      %v1917 = vand.u32 %v1602, 4294901760
      %v1918 = vsub.f32 %v1602, %v1917
      %v1919 = vand.u32 %v1918, 4294901760
      %1920 = vmatpush.msra.mxu0 %v1919
      %v1921 = vand.u32 %v1592, 4294901760
      %v1922 = vsub.f32 %v1592, %v1921
      %v1923 = vand.u32 %v1922, 4294901760
      %1924 = vmatpush.msra.mxu0 %v1923
      %v1925 = vand.u32 %v1582, 4294901760
      %v1926 = vsub.f32 %v1582, %v1925
      %v1927 = vand.u32 %v1926, 4294901760
      %1928 = vmatpush.msra.mxu0 %v1927
      %v1929 = vand.u32 %v714, 4294901760
      %1930 = vmatmul.f32.gmra.mxu0 %v1929
      %v1931 = vpop.f32.mrf.mxu0
      %v1932 = vadd.f32 %v1857, %v1931
      %v1933 = vand.u32 %v717, 4294901760
      %1934 = vmatmul.f32.gmra.mxu0 %v1933
      %v1935 = vpop.f32.mrf.mxu0
      %v1936 = vadd.f32 %v1863, %v1935
      %v1937 = vand.u32 %v720, 4294901760
      %1938 = vmatmul.f32.gmra.mxu0 %v1937
      %v1939 = vpop.f32.mrf.mxu0
      %v1940 = vadd.f32 %v1869, %v1939
      %v1941 = vand.u32 %v723, 4294901760
      %1942 = vmatmul.f32.gmra.mxu0 %v1941
      %v1943 = vpop.f32.mrf.mxu0
      %v1944 = vadd.f32 %v1875, %v1943
      %v1945 = vand.u32 %v726, 4294901760
      %1946 = vmatmul.f32.gmra.mxu0 %v1945
      %v1947 = vpop.f32.mrf.mxu0
      %v1948 = vadd.f32 %v1881, %v1947
      %v1949 = vand.u32 %v729, 4294901760
      %1950 = vmatmul.f32.gmra.mxu0 %v1949
      %v1951 = vpop.f32.mrf.mxu0
      %v1952 = vadd.f32 %v1887, %v1951
      %v1953 = vand.u32 %v732, 4294901760
      %1954 = vmatmul.f32.gmra.mxu0 %v1953
      %v1955 = vpop.f32.mrf.mxu0
      %v1956 = vadd.f32 %v1893, %v1955
      %v1957 = vand.u32 %v735, 4294901760
      %1958 = vmatmul.f32.gmra.mxu0 %v1957
      %v1959 = vpop.f32.mrf.mxu0
      %v1960 = vadd.f32 %v1899, %v1959
      %1961 = vdwg.mxu0
      %1962 = vmatpush.msra.mxu0 0.0
      %1963 = vmatpush.msra.mxu0 0.0
      %1964 = vmatpush.msra.mxu0 0.0
      %1965 = vmatpush.msra.mxu0 0.0
      %1966 = vmatpush.msra.mxu0 0.0
      %1967 = vmatpush.msra.mxu0 0.0
      %1968 = vmatpush.msra.mxu0 0.0
      %1969 = vmatpush.msra.mxu0 0.0
      %1970 = vmatpush.msra.mxu0 0.0
      %1971 = vmatpush.msra.mxu0 0.0
      %1972 = vmatpush.msra.mxu0 0.0
      %1973 = vmatpush.msra.mxu0 0.0
      %v1974 = vand.u32 %v1612, 4294901760
      %1975 = vmatpush.msra.mxu0 %v1974
      %v1976 = vand.u32 %v1602, 4294901760
      %1977 = vmatpush.msra.mxu0 %v1976
      %v1978 = vand.u32 %v1592, 4294901760
      %1979 = vmatpush.msra.mxu0 %v1978
      %v1980 = vand.u32 %v1582, 4294901760
      %1981 = vmatpush.msra.mxu0 %v1980
      %v1982 = vand.u32 %v714, 4294901760
      %1983 = vmatmul.f32.gmra.mxu0 %v1982
      %v1984 = vpop.f32.mrf.mxu0
      %v1985 = vadd.f32 %v1932, %v1984
      %v1986 = vand.u32 %v717, 4294901760
      %1987 = vmatmul.f32.gmra.mxu0 %v1986
      %v1988 = vpop.f32.mrf.mxu0
      %v1989 = vadd.f32 %v1936, %v1988
      %v1990 = vand.u32 %v720, 4294901760
      %1991 = vmatmul.f32.gmra.mxu0 %v1990
      %v1992 = vpop.f32.mrf.mxu0
      %v1993 = vadd.f32 %v1940, %v1992
      %v1994 = vand.u32 %v723, 4294901760
      %1995 = vmatmul.f32.gmra.mxu0 %v1994
      %v1996 = vpop.f32.mrf.mxu0
      %v1997 = vadd.f32 %v1944, %v1996
      %v1998 = vand.u32 %v726, 4294901760
      %1999 = vmatmul.f32.gmra.mxu0 %v1998
      %v2000 = vpop.f32.mrf.mxu0
      %v2001 = vadd.f32 %v1948, %v2000
      %v2002 = vand.u32 %v729, 4294901760
      %2003 = vmatmul.f32.gmra.mxu0 %v2002
      %v2004 = vpop.f32.mrf.mxu0
      %v2005 = vadd.f32 %v1952, %v2004
      %v2006 = vand.u32 %v732, 4294901760
      %2007 = vmatmul.f32.gmra.mxu0 %v2006
      %v2008 = vpop.f32.mrf.mxu0
      %v2009 = vadd.f32 %v1956, %v2008
      %v2010 = vand.u32 %v735, 4294901760
      %2011 = vmatmul.f32.gmra.mxu0 %v2010
      %v2012 = vpop.f32.mrf.mxu0
      %v2013 = vadd.f32 %v1960, %v2012
      %2014 = vdwg.mxu0
      %v2015 = vld [vmem:[%s294] sm:$0xff]
      %v2016 = vld [vmem:[%s294 + $0x8] sm:$0xff]
      %v2017 = vld [vmem:[%s294 + $0x10] sm:$0xff]
      %v2018 = vld [vmem:[%s294 + $0x18] sm:$0xff]
      %v2019 = vld [vmem:[%s294 + $0x20] sm:$0xff]
      %v2020 = vld [vmem:[%s294 + $0x28] sm:$0xff]
      %v2021 = vld [vmem:[%s294 + $0x30] sm:$0xff]
      %v2022 = vld [vmem:[%s294 + $0x38] sm:$0xff]
      %v2023 = vld [vmem:[%s300] sm:$0xff]
      %v2024 = vld [vmem:[%s300 + $0x8] sm:$0xff]
      %v2025 = vld [vmem:[%s300 + $0x10] sm:$0xff]
      %v2026 = vld [vmem:[%s300 + $0x18] sm:$0xff]
      %v2027 = vld [vmem:[%s300 + $0x20] sm:$0xff]
      %v2028 = vld [vmem:[%s300 + $0x28] sm:$0xff]
      %v2029 = vld [vmem:[%s300 + $0x30] sm:$0xff]
      %v2030 = vld [vmem:[%s300 + $0x38] sm:$0xff]
      %v2031 = vmul.f32 %v1985, %v2015
      %v2032 = vmul.f32 %v1989, %v2016
      %v2033 = vmul.f32 %v1993, %v2017
      %v2034 = vmul.f32 %v1997, %v2018
      %v2035 = vmul.f32 %v2001, %v2019
      %v2036 = vmul.f32 %v2005, %v2020
      %v2037 = vmul.f32 %v2009, %v2021
      %v2038 = vmul.f32 %v2013, %v2022
      %2040 = vset.pattern.permute.xlu0 0
      %2041 = vperm.xlu0 %2040, %v2031
      %v2042 = vpop.permute.xlu0 %2041
      %2045 = vset.pattern.permute.xlu0 0
      %2046 = vperm.xlu0 %2045, %v2032
      %v2047 = vpop.permute.xlu0 %2046
      %2050 = vset.pattern.permute.xlu0 0
      %2051 = vperm.xlu0 %2050, %v2033
      %v2052 = vpop.permute.xlu0 %2051
      %2055 = vset.pattern.permute.xlu0 0
      %2056 = vperm.xlu0 %2055, %v2034
      %v2057 = vpop.permute.xlu0 %2056
      %2060 = vset.pattern.permute.xlu0 0
      %2061 = vperm.xlu0 %2060, %v2035
      %v2062 = vpop.permute.xlu0 %2061
      %2065 = vset.pattern.permute.xlu0 0
      %2066 = vperm.xlu0 %2065, %v2036
      %v2067 = vpop.permute.xlu0 %2066
      %2070 = vset.pattern.permute.xlu0 0
      %2071 = vperm.xlu0 %2070, %v2037
      %v2072 = vpop.permute.xlu0 %2071
      %2075 = vset.pattern.permute.xlu0 0
      %2076 = vperm.xlu0 %2075, %v2038
      %v2077 = vpop.permute.xlu0 %2076
      %v2079 = vmul.f32 %v1179, %v2042
      %v2080 = vmul.f32 %v1180, %v2042
      %v2081 = vmul.f32 %v1181, %v2047
      %v2082 = vmul.f32 %v1182, %v2047
      %v2083 = vmul.f32 %v1183, %v2052
      %v2084 = vmul.f32 %v1184, %v2052
      %v2085 = vmul.f32 %v1185, %v2057
      %v2086 = vmul.f32 %v1186, %v2057
      %v2087 = vmul.f32 %v1187, %v2062
      %v2088 = vmul.f32 %v1188, %v2062
      %v2089 = vmul.f32 %v1189, %v2067
      %v2090 = vmul.f32 %v1190, %v2067
      %v2091 = vmul.f32 %v1191, %v2072
      %v2092 = vmul.f32 %v1192, %v2072
      %v2093 = vmul.f32 %v1193, %v2077
      %v2094 = vmul.f32 %v1194, %v2077
      %2096 = vset.pattern.permute.xlu0 0
      %2097 = vperm.xlu0 %2096, %v2023
      %v2098 = vpop.permute.xlu0 %2097
      %2101 = vset.pattern.permute.xlu0 0
      %2102 = vperm.xlu0 %2101, %v2024
      %v2103 = vpop.permute.xlu0 %2102
      %2106 = vset.pattern.permute.xlu0 0
      %2107 = vperm.xlu0 %2106, %v2025
      %v2108 = vpop.permute.xlu0 %2107
      %2111 = vset.pattern.permute.xlu0 0
      %2112 = vperm.xlu0 %2111, %v2026
      %v2113 = vpop.permute.xlu0 %2112
      %2116 = vset.pattern.permute.xlu0 0
      %2117 = vperm.xlu0 %2116, %v2027
      %v2118 = vpop.permute.xlu0 %2117
      %2121 = vset.pattern.permute.xlu0 0
      %2122 = vperm.xlu0 %2121, %v2028
      %v2123 = vpop.permute.xlu0 %2122
      %2126 = vset.pattern.permute.xlu0 0
      %2127 = vperm.xlu0 %2126, %v2029
      %v2128 = vpop.permute.xlu0 %2127
      %2131 = vset.pattern.permute.xlu0 0
      %2132 = vperm.xlu0 %2131, %v2030
      %v2133 = vpop.permute.xlu0 %2132
      %v2135 = vadd.f32 %v2079, %v2098
      %v2136 = vadd.f32 %v2080, %v2098
      %v2137 = vadd.f32 %v2081, %v2103
      %v2138 = vadd.f32 %v2082, %v2103
      %v2139 = vadd.f32 %v2083, %v2108
      %v2140 = vadd.f32 %v2084, %v2108
      %v2141 = vadd.f32 %v2085, %v2113
      %v2142 = vadd.f32 %v2086, %v2113
      %v2143 = vadd.f32 %v2087, %v2118
      %v2144 = vadd.f32 %v2088, %v2118
      %v2145 = vadd.f32 %v2089, %v2123
      %v2146 = vadd.f32 %v2090, %v2123
      %v2147 = vadd.f32 %v2091, %v2128
      %v2148 = vadd.f32 %v2092, %v2128
      %v2149 = vadd.f32 %v2093, %v2133
      %v2150 = vadd.f32 %v2094, %v2133
      %2151 = vst [vmem:[%s311] sm:$0xff] %v2135
      %2152 = vst [vmem:[%s311 + $0x8] sm:$0xff] %v2136
      %2153 = vst [vmem:[%s311 + $0x10] sm:$0xff] %v2137
      %2154 = vst [vmem:[%s311 + $0x18] sm:$0xff] %v2138
      %2155 = vst [vmem:[%s311 + $0x20] sm:$0xff] %v2139
      %2156 = vst [vmem:[%s311 + $0x28] sm:$0xff] %v2140
      %2157 = vst [vmem:[%s311 + $0x30] sm:$0xff] %v2141
      %2158 = vst [vmem:[%s311 + $0x38] sm:$0xff] %v2142
      %2159 = vst [vmem:[%s311 + $0x40] sm:$0xff] %v2143
      %2160 = vst [vmem:[%s311 + $0x48] sm:$0xff] %v2144
      %2161 = vst [vmem:[%s311 + $0x50] sm:$0xff] %v2145
      %2162 = vst [vmem:[%s311 + $0x58] sm:$0xff] %v2146
      %2163 = vst [vmem:[%s311 + $0x60] sm:$0xff] %v2147
      %2164 = vst [vmem:[%s311 + $0x68] sm:$0xff] %v2148
      %2165 = vst [vmem:[%s311 + $0x70] sm:$0xff] %v2149
      %2166 = vst [vmem:[%s311 + $0x78] sm:$0xff] %v2150
      %s2167 = smul.u32 8, %s21
      %p2168 = scmp.lt.s32.totalorder %s20, 1
      %s2169 = scalar_select %p2168, %s20, 1
      %p2170 = scmp.lt.s32.totalorder %s2167, 7
      %s2171 = scalar_select %p2170, %s2167, 7
      %s2172 = smul.addr %s2171, 2
      %s2173 = smul.addr %s2169, 16
      %s2174 = sadd.s32 %s2172, %s2173
      %s2175 = smul.addr %s2174, 8
      %s2176 = scalar_lea.vmem %s5, %s2175
      // Predicated region
      $region41: #{group_norm.1} parent=39 // pred_check
        %p2177 = pneg %p170
      $region42: #{group_norm.1} parent=39 // pred_check_branch
        %2179 = sbr.rel (%p2177) target = $region44
      $region43: #{group_norm.1} parent=39 // pred_region
        %s2180 = smul.u32 8, %s21
      $region44: #{group_norm.1} parent=39 // pred_fallthru
        _
    $region40: #{group_norm.1} parent=5 // pred_fallthru
      _
    %p2181 = scmp.le.s32.totalorder 2, %s11
    // Predicated region
    $region45: #{group_norm.1} parent=5 // pred_check
      %p2182 = pneg %p2181
    $region46: #{group_norm.1} parent=5 // pred_check_branch
      %2184 = sbr.rel (%p2182) target = $region48
    $region47: #{group_norm.1} parent=5 // pred_region
      %s2185 = ssub.s32 %s11, 2
      // Predicated region
      $region49: #{group_norm.1} parent=47 // pred_check
        %p2186 = pneg %p176
      $region50: #{group_norm.1} parent=47 // pred_check_branch
        %2188 = sbr.rel (%p2186) target = $region52
      $region51: #{group_norm.1} parent=47 // pred_region
        %s2189 = smul.u32 8, %s23
        %p2190 = scmp.lt.s32.totalorder %s22, 1
        %s2191 = scalar_select %p2190, %s22, 1
        %p2192 = scmp.lt.s32.totalorder %s2189, 7
        %s2193 = scalar_select %p2192, %s2189, 7
        %s2194 = smul.addr %s2193, 2
        %s2195 = smul.addr %s2191, 16
        %s2196 = sadd.s32 %s2194, %s2195
        %s2197 = smul.addr %s2196, 8
        %s2198 = scalar_lea.vmem %s5, %s2197
      $region52: #{group_norm.1} parent=47 // pred_fallthru
        _
    $region48: #{group_norm.1} parent=5 // pred_fallthru
      _
  $region6: #{group_norm.1} parent=0 // loop_footer
    %s15 = sadd.s32 1, %s11
  $region7: #{group_norm.1} parent=0 // loop_footer_branch
    %10 = sbr.rel target = $region3
  $region8: #{group_norm.1} parent=0 // loop_exit
    _

</llo_original>
